<compile_context>
chip_gen: v6e
topology: v6e:2x2x1
jax: 0.10.0
libtpu: 0.0.40
codegen_flags: <defaults>
</compile_context>

<pallas_src>
import functools

import jax
import jax.numpy as jnp
import numpy as np
from jax import lax
from jax.experimental import pallas as pl
from jax.experimental.pallas import tpu as pltpu


def _intern_attn_kernel(x_ref, wq_ref, bq_ref, wk_ref, bk_ref, wv_ref, bv_ref,
                        qnw_ref, knw_ref, wproj_ref, bproj_ref,
                        o_ref,
                        q_sc, k_sc, v_sc, acc_ref,
                        *, N, C, H, D, eps):
    # x block is (1, N, C) bf16 (cast once in the wrapper); squeeze batch dim.
    x_bf = x_ref[0]                                             # (N, C) bf16

    def rmsnorm(h, w):
        # Elementwise math stays f32 (v5e has no bf16 VPU/EUP).
        var = jnp.mean(h * h, axis=-1, keepdims=True)
        return w * (h * lax.rsqrt(var + eps))

    # ---- Q projection -> RMSNorm (scale pre-folded into qnw) -> bf16 ----
    q = jnp.dot(x_bf, wq_ref[...], preferred_element_type=jnp.float32) + bq_ref[0]
    q = rmsnorm(q, qnw_ref[0]).astype(jnp.bfloat16)             # (N, C) bf16
    # One-time O(N*C) scatter to head-major scratch (static lane slices; at
    # production D=128 these are lane-aligned).  The f32/bf16 (N, C) value is
    # dead after this loop.
    for h in range(H):
        q_sc[h] = q[:, h * D:(h + 1) * D]

    # ---- K projection -> RMSNorm -> bf16 ----
    k = jnp.dot(x_bf, wk_ref[...], preferred_element_type=jnp.float32) + bk_ref[0]
    k = rmsnorm(k, knw_ref[0]).astype(jnp.bfloat16)
    for h in range(H):
        k_sc[h] = k[:, h * D:(h + 1) * D]

    # ---- V projection -> bf16 ----
    v = (jnp.dot(x_bf, wv_ref[...], preferred_element_type=jnp.float32)
         + bv_ref[0]).astype(jnp.bfloat16)
    for h in range(H):
        v_sc[h] = v[:, h * D:(h + 1) * D]

    # ---- Per-head attention, rolled loop, f32 VMEM accumulator.  The head
    #      merge is folded into the output projection: ctx_h @ wproj[h]
    #      accumulates directly into the (N, C) accumulator (no concat). ----
    acc_ref[...] = jnp.zeros_like(acc_ref)

    def head_body(h, carry):
        qh = q_sc[h]                                            # (N, D) bf16
        kh = k_sc[h]                                            # leading-axis
        vh = v_sc[h]                                            # indices: free

        # scores: contract over D on both operands (no explicit k transpose)
        s = jnp.einsum('nd,md->nm', qh, kh,
                       preferred_element_type=jnp.float32)      # (N, N) f32
        s = s - jnp.max(s, axis=-1, keepdims=True)
        e = jnp.exp(s)                                          # f32 (v5e-safe)
        denom = jnp.sum(e, axis=-1, keepdims=True)              # (N, 1) f32

        ctx = jnp.dot(e.astype(jnp.bfloat16), vh,
                      preferred_element_type=jnp.float32)       # (N, D) f32
        # Deferred softmax normalization: N*D multiplies instead of N*N.
        ctx = ctx * pl.reciprocal(denom, approx=True)

        acc_ref[...] += jnp.dot(ctx.astype(jnp.bfloat16), wproj_ref[h],
                                preferred_element_type=jnp.float32)  # (N, C)
        return carry

    lax.fori_loop(0, H, head_body, 0)

    o_ref[0] = acc_ref[...] + bproj_ref[0]


def intern_attention(x, params, *, num_heads, eps=1e-6):
    """x: (B, N, C) float32. Returns (B, N, C) float32."""
    B, N, C = x.shape
    H = num_heads
    D = C // H
    scale = float(D) ** -0.5
    f32 = jnp.float32

    # ---- wrapper-side param prep (done once, outside the kernel) ----
    wqkv = params["wqkv"].astype(f32)                     # (3C, C)
    bqkv = params["bqkv"].astype(f32)                     # (3C,)
    # Split into per-projection weights, pre-transpose to MXU-natural
    # (C_in, C_out) layout, cast to bf16 once.
    wq_t = jnp.asarray(wqkv[0 * C:1 * C].T, jnp.bfloat16)      # (C, C)
    wk_t = jnp.asarray(wqkv[1 * C:2 * C].T, jnp.bfloat16)
    wv_t = jnp.asarray(wqkv[2 * C:3 * C].T, jnp.bfloat16)
    bq = bqkv[0 * C:1 * C].reshape(1, C)
    bk = bqkv[1 * C:2 * C].reshape(1, C)
    bv = bqkv[2 * C:3 * C].reshape(1, C)
    # Output projection: pre-transpose to (C_in, C_out), reshape head-major
    # (H, D, C) so in-kernel per-head access is a leading-axis index.
    wproj_hdc = jnp.asarray(
        params["wproj"].astype(f32).T.reshape(H, D, C), jnp.bfloat16)
    bproj = params["bproj"].astype(f32).reshape(1, C)
    # Fold attention scale into the q-norm weight (RMSNorm multiplies the
    # normalized activations by the weight, so this is exact).
    qnw = (params["q_norm_w"].astype(f32) * scale).reshape(1, C)
    knw = params["k_norm_w"].astype(f32).reshape(1, C)

    # bf16 activations in: halves x DMA + its double-buffer VMEM footprint.
    x_bf = x.astype(jnp.bfloat16)

    kernel = functools.partial(_intern_attn_kernel,
                               N=N, C=C, H=H, D=D, eps=eps)

    grid_spec = pltpu.PrefetchScalarGridSpec(
        num_scalar_prefetch=0,
        grid=(B,),
        in_specs=[
            pl.BlockSpec((1, N, C), lambda b: (b, 0, 0)),      # x (bf16)
            pl.BlockSpec((C, C), lambda b: (0, 0)),            # wq^T (bf16)
            pl.BlockSpec((1, C), lambda b: (0, 0)),            # bq
            pl.BlockSpec((C, C), lambda b: (0, 0)),            # wk^T (bf16)
            pl.BlockSpec((1, C), lambda b: (0, 0)),            # bk
            pl.BlockSpec((C, C), lambda b: (0, 0)),            # wv^T (bf16)
            pl.BlockSpec((1, C), lambda b: (0, 0)),            # bv
            pl.BlockSpec((1, C), lambda b: (0, 0)),            # q_norm_w*scale
            pl.BlockSpec((1, C), lambda b: (0, 0)),            # k_norm_w
            pl.BlockSpec((H, D, C), lambda b: (0, 0, 0)),      # wproj (H,D,C)
            pl.BlockSpec((1, C), lambda b: (0, 0)),            # bproj
        ],
        out_specs=pl.BlockSpec((1, N, C), lambda b: (b, 0, 0)),
        scratch_shapes=[
            pltpu.VMEM((H, N, D), jnp.bfloat16),   # q, head-major
            pltpu.VMEM((H, N, D), jnp.bfloat16),   # k
            pltpu.VMEM((H, N, D), jnp.bfloat16),   # v
            pltpu.VMEM((N, C), jnp.float32),       # output accumulator
        ],
    )

    # Advisory cost estimate for XLA scheduling around the custom call.
    flops = B * (3 * 2 * N * C * C            # q/k/v projections
                 + H * 2 * (2 * N * N * D)    # QK^T + PV per head
                 + 2 * N * C * C)             # head-folded output projection
    transcendentals = B * (H * N * N + 2 * N)
    bytes_accessed = (B * N * C * (2 + 4)           # x bf16 in, out f32
                      + 4 * C * C * 2               # wq/wk/wv/wproj bf16
                      + 7 * C * 4)                  # biases + norm weights f32

    return pl.pallas_call(
        kernel,
        out_shape=jax.ShapeDtypeStruct((B, N, C), jnp.float32),
        grid_spec=grid_spec,
        compiler_params=pltpu.CompilerParams(
            dimension_semantics=("parallel",),
            vmem_limit_bytes=64 * 1024 * 1024),
        cost_estimate=pl.CostEstimate(flops=flops,
                                      transcendentals=transcendentals,
                                      bytes_accessed=bytes_accessed),
    )(x_bf, wq_t, bq, wk_t, bk, wv_t, bv, qnw, knw, wproj_hdc, bproj)


def _reference(x, params, *, num_heads, eps=1e-6):
    """Pure-JAX f32 reference mirroring InternAttention._naive_attn (eval)."""
    B, N, C = x.shape
    H = num_heads
    D = C // H
    scale = D ** -0.5
    qkv = x @ params["wqkv"].T + params["bqkv"]              # (B, N, 3C)
    qkv = qkv.reshape(B, N, 3, H, D).transpose(2, 0, 3, 1, 4)
    q, k, v = qkv[0], qkv[1], qkv[2]                         # (B, H, N, D)

    def rms(h, w):  # h: (B, N, C)
        var = jnp.mean(h * h, axis=-1, keepdims=True)
        return w * (h * jax.lax.rsqrt(var + eps))

    q = rms(q.transpose(0, 2, 1, 3).reshape(B, N, C), params["q_norm_w"])
    q = q.reshape(B, N, H, D).transpose(0, 2, 1, 3)
    k = rms(k.transpose(0, 2, 1, 3).reshape(B, N, C), params["k_norm_w"])
    k = k.reshape(B, N, H, D).transpose(0, 2, 1, 3)

    attn = jnp.einsum("bhnd,bhmd->bhnm", q * scale, k)
    attn = jax.nn.softmax(attn, axis=-1)
    ctx = jnp.einsum("bhnm,bhmd->bhnd", attn, v)
    ctx = ctx.transpose(0, 2, 1, 3).reshape(B, N, C)
    return ctx @ params["wproj"].T + params["bproj"]


if __name__ == "__main__":
    # Small config: hidden_size=32, num_attention_heads=4, seq=8, batch=2,
    # qkv_bias=True, qk_normalization=True, dropout=0 (eval mode).
    # NOTE: this toy shape is non-representative for benchmarking (sub-MXU
    # tiles, masked lane stores, grid-step overhead); use production shapes
    # (C=3200, N~1025, H=25, D=128) for any perf measurement.
    B, N, C, H = 2, 8, 32, 4

    key = jax.random.PRNGKey(0)
    k_x, k_wqkv, k_bqkv, k_wproj, k_bproj = jax.random.split(key, 5)

    x = jax.random.normal(k_x, (B, N, C), dtype=jnp.float32)

    params = {
        "wqkv": 0.05 * jax.random.normal(k_wqkv, (3 * C, C), dtype=jnp.float32),
        "bqkv": 0.05 * jax.random.normal(k_bqkv, (3 * C,), dtype=jnp.float32),
        # InternRMSNorm weights init to ones; perturb deterministically so the
        # normalization weight actually participates.
        "q_norm_w": jnp.ones((C,), jnp.float32) + 0.01 * jnp.arange(C, dtype=jnp.float32),
        "k_norm_w": jnp.ones((C,), jnp.float32) - 0.01 * jnp.arange(C, dtype=jnp.float32),
        "wproj": 0.05 * jax.random.normal(k_wproj, (C, C), dtype=jnp.float32),
        "bproj": 0.05 * jax.random.normal(k_bproj, (C,), dtype=jnp.float32),
    }

    out = intern_attention(x, params, num_heads=H)
    out = jax.block_until_ready(out)

    ref = _reference(x, params, num_heads=H)
    # bf16 MXU operands (f32 accumulation) + approx-reciprocal softmax ->
    # relaxed tolerance vs the f32 reference.
    np.testing.assert_allclose(np.asarray(out), np.asarray(ref),
                               rtol=2e-2, atol=2e-2)

    print("KERNEL_OK")
</pallas_src>

<mosaic_0001>
module attributes {stable_mosaic.version = 11 : i64} {
  func.func @_intern_attn_kernel(%arg0: i32, %arg1: memref<1x8x32xbf16, #tpu.memory_space<vmem>>, %arg2: memref<32x32xbf16, #tpu.memory_space<vmem>>, %arg3: memref<1x32xf32, #tpu.memory_space<vmem>>, %arg4: memref<32x32xbf16, #tpu.memory_space<vmem>>, %arg5: memref<1x32xf32, #tpu.memory_space<vmem>>, %arg6: memref<32x32xbf16, #tpu.memory_space<vmem>>, %arg7: memref<1x32xf32, #tpu.memory_space<vmem>>, %arg8: memref<1x32xf32, #tpu.memory_space<vmem>>, %arg9: memref<1x32xf32, #tpu.memory_space<vmem>>, %arg10: memref<4x8x32xbf16, #tpu.memory_space<vmem>>, %arg11: memref<1x32xf32, #tpu.memory_space<vmem>>, %arg12: memref<1x8x32xf32, #tpu.memory_space<vmem>>, %arg13: memref<4x8x8xbf16, #tpu.memory_space<vmem>>, %arg14: memref<4x8x8xbf16, #tpu.memory_space<vmem>>, %arg15: memref<4x8x8xbf16, #tpu.memory_space<vmem>>, %arg16: memref<8x32xf32, #tpu.memory_space<vmem>>) attributes {dimension_semantics = [#tpu.dimension_semantics<parallel>], iteration_bounds = array<i64: 2>, scalar_prefetch = 0 : i64, scratch_operands = 4 : i64, tpu.core_type = #tpu.core_type<tc>, window_params = [{transform_indices = @transform_0, window_bounds = array<i64: 1, 8, 32>}, {pipeline_mode = #tpu.pipeline_mode<synchronous>, transform_indices = @transform_1, window_bounds = array<i64: 32, 32>}, {pipeline_mode = #tpu.pipeline_mode<synchronous>, transform_indices = @transform_2, window_bounds = array<i64: 1, 32>}, {pipeline_mode = #tpu.pipeline_mode<synchronous>, transform_indices = @transform_3, window_bounds = array<i64: 32, 32>}, {pipeline_mode = #tpu.pipeline_mode<synchronous>, transform_indices = @transform_4, window_bounds = array<i64: 1, 32>}, {pipeline_mode = #tpu.pipeline_mode<synchronous>, transform_indices = @transform_5, window_bounds = array<i64: 32, 32>}, {pipeline_mode = #tpu.pipeline_mode<synchronous>, transform_indices = @transform_6, window_bounds = array<i64: 1, 32>}, {pipeline_mode = #tpu.pipeline_mode<synchronous>, transform_indices = @transform_7, window_bounds = array<i64: 1, 32>}, {pipeline_mode = #tpu.pipeline_mode<synchronous>, transform_indices = @transform_8, window_bounds = array<i64: 1, 32>}, {pipeline_mode = #tpu.pipeline_mode<synchronous>, transform_indices = @transform_9, window_bounds = array<i64: 4, 8, 32>}, {pipeline_mode = #tpu.pipeline_mode<synchronous>, transform_indices = @transform_10, window_bounds = array<i64: 1, 32>}, {transform_indices = @transform_11, window_bounds = array<i64: 1, 8, 32>}]} {
    %c0 = arith.constant 0 : index
    %c0_0 = arith.constant 0 : index
    %c0_1 = arith.constant 0 : index
    %0 = vector.load %arg1[%c0, %c0_0, %c0_1] : memref<1x8x32xbf16, #tpu.memory_space<vmem>>, vector<1x8x32xbf16>
    %1 = vector.shape_cast %0 : vector<1x8x32xbf16> to vector<8x32xbf16>
    %c0_2 = arith.constant 0 : index
    %c0_3 = arith.constant 0 : index
    %2 = vector.load %arg2[%c0_2, %c0_3] : memref<32x32xbf16, #tpu.memory_space<vmem>>, vector<32x32xbf16>
    %cst = arith.constant dense<0.000000e+00> : vector<8x32xf32>
    %3 = tpu.matmul %1, %2, %cst {dimension_numbers = #tpu.dot_dimension_numbers<[1], [0], [0], [1], [0, 0, 1, 1], [], []>} : vector<8x32xbf16>, vector<32x32xbf16>, vector<8x32xf32> -> vector<8x32xf32>
    %c0_4 = arith.constant 0 : index
    %c0_5 = arith.constant 0 : index
    %4 = vector.load %arg3[%c0_4, %c0_5] : memref<1x32xf32, #tpu.memory_space<vmem>>, vector<1x32xf32>
    %5 = vector.shape_cast %4 : vector<1x32xf32> to vector<32xf32>
    %6 = vector.shape_cast %5 : vector<32xf32> to vector<1x32xf32>
    %7 = vector.broadcast %6 : vector<1x32xf32> to vector<8x32xf32>
    %8 = arith.addf %3, %7 : vector<8x32xf32>
    %c0_6 = arith.constant 0 : index
    %c0_7 = arith.constant 0 : index
    %9 = vector.load %arg8[%c0_6, %c0_7] : memref<1x32xf32, #tpu.memory_space<vmem>>, vector<1x32xf32>
    %10 = vector.shape_cast %9 : vector<1x32xf32> to vector<32xf32>
    %11 = arith.mulf %8, %8 : vector<8x32xf32>
    %cst_8 = arith.constant dense<0.000000e+00> : vector<8xf32>
    %12 = vector.multi_reduction <add>, %11, %cst_8 [1] : vector<8x32xf32> to vector<8xf32>
    %13 = vector.shape_cast %12 : vector<8xf32> to vector<8x1xf32>
    %cst_9 = arith.constant 3.200000e+01 : f32
    %14 = vector.broadcast %cst_9 : f32 to vector<8x1xf32>
    %15 = arith.divf %13, %14 : vector<8x1xf32>
    %cst_10 = arith.constant 9.99999997E-7 : f32
    %16 = vector.broadcast %cst_10 : f32 to vector<8x1xf32>
    %17 = arith.addf %15, %16 : vector<8x1xf32>
    %18 = math.rsqrt %17 : vector<8x1xf32>
    %19 = vector.broadcast %18 : vector<8x1xf32> to vector<8x32xf32>
    %20 = arith.mulf %8, %19 : vector<8x32xf32>
    %21 = vector.shape_cast %10 : vector<32xf32> to vector<1x32xf32>
    %22 = vector.broadcast %21 : vector<1x32xf32> to vector<8x32xf32>
    %23 = arith.mulf %22, %20 : vector<8x32xf32>
    %24 = arith.truncf %23 : vector<8x32xf32> to vector<8x32xbf16>
    %25 = vector.extract_strided_slice %24 {offsets = [0, 0], sizes = [8, 8], strides = [1, 1]} : vector<8x32xbf16> to vector<8x8xbf16>
    %c0_11 = arith.constant 0 : index
    %c0_12 = arith.constant 0 : index
    %c0_13 = arith.constant 0 : index
    %26 = vector.load %arg13[%c0_11, %c0_12, %c0_13] : memref<4x8x8xbf16, #tpu.memory_space<vmem>>, vector<1x8x8xbf16>
    %27 = vector.shape_cast %26 : vector<1x8x8xbf16> to vector<8x8xbf16>
    %28 = vector.shape_cast %25 : vector<8x8xbf16> to vector<1x8x8xbf16>
    tpu.vector_store %arg13[%c0_11, %c0_12, %c0_13], %28 {strides = array<i32>} : memref<4x8x8xbf16, #tpu.memory_space<vmem>>, vector<1x8x8xbf16>,
    %29 = vector.extract_strided_slice %24 {offsets = [0, 8], sizes = [8, 8], strides = [1, 1]} : vector<8x32xbf16> to vector<8x8xbf16>
    %c1 = arith.constant 1 : index
    %c0_14 = arith.constant 0 : index
    %c0_15 = arith.constant 0 : index
    %30 = vector.load %arg13[%c1, %c0_14, %c0_15] : memref<4x8x8xbf16, #tpu.memory_space<vmem>>, vector<1x8x8xbf16>
    %31 = vector.shape_cast %30 : vector<1x8x8xbf16> to vector<8x8xbf16>
    %32 = vector.shape_cast %29 : vector<8x8xbf16> to vector<1x8x8xbf16>
    tpu.vector_store %arg13[%c1, %c0_14, %c0_15], %32 {strides = array<i32>} : memref<4x8x8xbf16, #tpu.memory_space<vmem>>, vector<1x8x8xbf16>,
    %33 = vector.extract_strided_slice %24 {offsets = [0, 16], sizes = [8, 8], strides = [1, 1]} : vector<8x32xbf16> to vector<8x8xbf16>
    %c2 = arith.constant 2 : index
    %c0_16 = arith.constant 0 : index
    %c0_17 = arith.constant 0 : index
    %34 = vector.load %arg13[%c2, %c0_16, %c0_17] : memref<4x8x8xbf16, #tpu.memory_space<vmem>>, vector<1x8x8xbf16>
    %35 = vector.shape_cast %34 : vector<1x8x8xbf16> to vector<8x8xbf16>
    %36 = vector.shape_cast %33 : vector<8x8xbf16> to vector<1x8x8xbf16>
    tpu.vector_store %arg13[%c2, %c0_16, %c0_17], %36 {strides = array<i32>} : memref<4x8x8xbf16, #tpu.memory_space<vmem>>, vector<1x8x8xbf16>,
    %37 = vector.extract_strided_slice %24 {offsets = [0, 24], sizes = [8, 8], strides = [1, 1]} : vector<8x32xbf16> to vector<8x8xbf16>
    %c3 = arith.constant 3 : index
    %c0_18 = arith.constant 0 : index
    %c0_19 = arith.constant 0 : index
    %38 = vector.load %arg13[%c3, %c0_18, %c0_19] : memref<4x8x8xbf16, #tpu.memory_space<vmem>>, vector<1x8x8xbf16>
    %39 = vector.shape_cast %38 : vector<1x8x8xbf16> to vector<8x8xbf16>
    %40 = vector.shape_cast %37 : vector<8x8xbf16> to vector<1x8x8xbf16>
    tpu.vector_store %arg13[%c3, %c0_18, %c0_19], %40 {strides = array<i32>} : memref<4x8x8xbf16, #tpu.memory_space<vmem>>, vector<1x8x8xbf16>,
    %c0_20 = arith.constant 0 : index
    %c0_21 = arith.constant 0 : index
    %41 = vector.load %arg4[%c0_20, %c0_21] : memref<32x32xbf16, #tpu.memory_space<vmem>>, vector<32x32xbf16>
    %cst_22 = arith.constant dense<0.000000e+00> : vector<8x32xf32>
    %42 = tpu.matmul %1, %41, %cst_22 {dimension_numbers = #tpu.dot_dimension_numbers<[1], [0], [0], [1], [0, 0, 1, 1], [], []>} : vector<8x32xbf16>, vector<32x32xbf16>, vector<8x32xf32> -> vector<8x32xf32>
    %c0_23 = arith.constant 0 : index
    %c0_24 = arith.constant 0 : index
    %43 = vector.load %arg5[%c0_23, %c0_24] : memref<1x32xf32, #tpu.memory_space<vmem>>, vector<1x32xf32>
    %44 = vector.shape_cast %43 : vector<1x32xf32> to vector<32xf32>
    %45 = vector.shape_cast %44 : vector<32xf32> to vector<1x32xf32>
    %46 = vector.broadcast %45 : vector<1x32xf32> to vector<8x32xf32>
    %47 = arith.addf %42, %46 : vector<8x32xf32>
    %c0_25 = arith.constant 0 : index
    %c0_26 = arith.constant 0 : index
    %48 = vector.load %arg9[%c0_25, %c0_26] : memref<1x32xf32, #tpu.memory_space<vmem>>, vector<1x32xf32>
    %49 = vector.shape_cast %48 : vector<1x32xf32> to vector<32xf32>
    %50 = arith.mulf %47, %47 : vector<8x32xf32>
    %cst_27 = arith.constant dense<0.000000e+00> : vector<8xf32>
    %51 = vector.multi_reduction <add>, %50, %cst_27 [1] : vector<8x32xf32> to vector<8xf32>
    %52 = vector.shape_cast %51 : vector<8xf32> to vector<8x1xf32>
    %cst_28 = arith.constant 3.200000e+01 : f32
    %53 = vector.broadcast %cst_28 : f32 to vector<8x1xf32>
    %54 = arith.divf %52, %53 : vector<8x1xf32>
    %cst_29 = arith.constant 9.99999997E-7 : f32
    %55 = vector.broadcast %cst_29 : f32 to vector<8x1xf32>
    %56 = arith.addf %54, %55 : vector<8x1xf32>
    %57 = math.rsqrt %56 : vector<8x1xf32>
    %58 = vector.broadcast %57 : vector<8x1xf32> to vector<8x32xf32>
    %59 = arith.mulf %47, %58 : vector<8x32xf32>
    %60 = vector.shape_cast %49 : vector<32xf32> to vector<1x32xf32>
    %61 = vector.broadcast %60 : vector<1x32xf32> to vector<8x32xf32>
    %62 = arith.mulf %61, %59 : vector<8x32xf32>
    %63 = arith.truncf %62 : vector<8x32xf32> to vector<8x32xbf16>
    %64 = vector.extract_strided_slice %63 {offsets = [0, 0], sizes = [8, 8], strides = [1, 1]} : vector<8x32xbf16> to vector<8x8xbf16>
    %c0_30 = arith.constant 0 : index
    %c0_31 = arith.constant 0 : index
    %c0_32 = arith.constant 0 : index
    %65 = vector.load %arg14[%c0_30, %c0_31, %c0_32] : memref<4x8x8xbf16, #tpu.memory_space<vmem>>, vector<1x8x8xbf16>
    %66 = vector.shape_cast %65 : vector<1x8x8xbf16> to vector<8x8xbf16>
    %67 = vector.shape_cast %64 : vector<8x8xbf16> to vector<1x8x8xbf16>
    tpu.vector_store %arg14[%c0_30, %c0_31, %c0_32], %67 {strides = array<i32>} : memref<4x8x8xbf16, #tpu.memory_space<vmem>>, vector<1x8x8xbf16>,
    %68 = vector.extract_strided_slice %63 {offsets = [0, 8], sizes = [8, 8], strides = [1, 1]} : vector<8x32xbf16> to vector<8x8xbf16>
    %c1_33 = arith.constant 1 : index
    %c0_34 = arith.constant 0 : index
    %c0_35 = arith.constant 0 : index
    %69 = vector.load %arg14[%c1_33, %c0_34, %c0_35] : memref<4x8x8xbf16, #tpu.memory_space<vmem>>, vector<1x8x8xbf16>
    %70 = vector.shape_cast %69 : vector<1x8x8xbf16> to vector<8x8xbf16>
    %71 = vector.shape_cast %68 : vector<8x8xbf16> to vector<1x8x8xbf16>
    tpu.vector_store %arg14[%c1_33, %c0_34, %c0_35], %71 {strides = array<i32>} : memref<4x8x8xbf16, #tpu.memory_space<vmem>>, vector<1x8x8xbf16>,
    %72 = vector.extract_strided_slice %63 {offsets = [0, 16], sizes = [8, 8], strides = [1, 1]} : vector<8x32xbf16> to vector<8x8xbf16>
    %c2_36 = arith.constant 2 : index
    %c0_37 = arith.constant 0 : index
    %c0_38 = arith.constant 0 : index
    %73 = vector.load %arg14[%c2_36, %c0_37, %c0_38] : memref<4x8x8xbf16, #tpu.memory_space<vmem>>, vector<1x8x8xbf16>
    %74 = vector.shape_cast %73 : vector<1x8x8xbf16> to vector<8x8xbf16>
    %75 = vector.shape_cast %72 : vector<8x8xbf16> to vector<1x8x8xbf16>
    tpu.vector_store %arg14[%c2_36, %c0_37, %c0_38], %75 {strides = array<i32>} : memref<4x8x8xbf16, #tpu.memory_space<vmem>>, vector<1x8x8xbf16>,
    %76 = vector.extract_strided_slice %63 {offsets = [0, 24], sizes = [8, 8], strides = [1, 1]} : vector<8x32xbf16> to vector<8x8xbf16>
    %c3_39 = arith.constant 3 : index
    %c0_40 = arith.constant 0 : index
    %c0_41 = arith.constant 0 : index
    %77 = vector.load %arg14[%c3_39, %c0_40, %c0_41] : memref<4x8x8xbf16, #tpu.memory_space<vmem>>, vector<1x8x8xbf16>
    %78 = vector.shape_cast %77 : vector<1x8x8xbf16> to vector<8x8xbf16>
    %79 = vector.shape_cast %76 : vector<8x8xbf16> to vector<1x8x8xbf16>
    tpu.vector_store %arg14[%c3_39, %c0_40, %c0_41], %79 {strides = array<i32>} : memref<4x8x8xbf16, #tpu.memory_space<vmem>>, vector<1x8x8xbf16>,
    %c0_42 = arith.constant 0 : index
    %c0_43 = arith.constant 0 : index
    %80 = vector.load %arg6[%c0_42, %c0_43] : memref<32x32xbf16, #tpu.memory_space<vmem>>, vector<32x32xbf16>
    %cst_44 = arith.constant dense<0.000000e+00> : vector<8x32xf32>
    %81 = tpu.matmul %1, %80, %cst_44 {dimension_numbers = #tpu.dot_dimension_numbers<[1], [0], [0], [1], [0, 0, 1, 1], [], []>} : vector<8x32xbf16>, vector<32x32xbf16>, vector<8x32xf32> -> vector<8x32xf32>
    %c0_45 = arith.constant 0 : index
    %c0_46 = arith.constant 0 : index
    %82 = vector.load %arg7[%c0_45, %c0_46] : memref<1x32xf32, #tpu.memory_space<vmem>>, vector<1x32xf32>
    %83 = vector.shape_cast %82 : vector<1x32xf32> to vector<32xf32>
    %84 = vector.shape_cast %83 : vector<32xf32> to vector<1x32xf32>
    %85 = vector.broadcast %84 : vector<1x32xf32> to vector<8x32xf32>
    %86 = arith.addf %81, %85 : vector<8x32xf32>
    %87 = arith.truncf %86 : vector<8x32xf32> to vector<8x32xbf16>
    %88 = vector.extract_strided_slice %87 {offsets = [0, 0], sizes = [8, 8], strides = [1, 1]} : vector<8x32xbf16> to vector<8x8xbf16>
    %c0_47 = arith.constant 0 : index
    %c0_48 = arith.constant 0 : index
    %c0_49 = arith.constant 0 : index
    %89 = vector.load %arg15[%c0_47, %c0_48, %c0_49] : memref<4x8x8xbf16, #tpu.memory_space<vmem>>, vector<1x8x8xbf16>
    %90 = vector.shape_cast %89 : vector<1x8x8xbf16> to vector<8x8xbf16>
    %91 = vector.shape_cast %88 : vector<8x8xbf16> to vector<1x8x8xbf16>
    tpu.vector_store %arg15[%c0_47, %c0_48, %c0_49], %91 {strides = array<i32>} : memref<4x8x8xbf16, #tpu.memory_space<vmem>>, vector<1x8x8xbf16>,
    %92 = vector.extract_strided_slice %87 {offsets = [0, 8], sizes = [8, 8], strides = [1, 1]} : vector<8x32xbf16> to vector<8x8xbf16>
    %c1_50 = arith.constant 1 : index
    %c0_51 = arith.constant 0 : index
    %c0_52 = arith.constant 0 : index
    %93 = vector.load %arg15[%c1_50, %c0_51, %c0_52] : memref<4x8x8xbf16, #tpu.memory_space<vmem>>, vector<1x8x8xbf16>
    %94 = vector.shape_cast %93 : vector<1x8x8xbf16> to vector<8x8xbf16>
    %95 = vector.shape_cast %92 : vector<8x8xbf16> to vector<1x8x8xbf16>
    tpu.vector_store %arg15[%c1_50, %c0_51, %c0_52], %95 {strides = array<i32>} : memref<4x8x8xbf16, #tpu.memory_space<vmem>>, vector<1x8x8xbf16>,
    %96 = vector.extract_strided_slice %87 {offsets = [0, 16], sizes = [8, 8], strides = [1, 1]} : vector<8x32xbf16> to vector<8x8xbf16>
    %c2_53 = arith.constant 2 : index
    %c0_54 = arith.constant 0 : index
    %c0_55 = arith.constant 0 : index
    %97 = vector.load %arg15[%c2_53, %c0_54, %c0_55] : memref<4x8x8xbf16, #tpu.memory_space<vmem>>, vector<1x8x8xbf16>
    %98 = vector.shape_cast %97 : vector<1x8x8xbf16> to vector<8x8xbf16>
    %99 = vector.shape_cast %96 : vector<8x8xbf16> to vector<1x8x8xbf16>
    tpu.vector_store %arg15[%c2_53, %c0_54, %c0_55], %99 {strides = array<i32>} : memref<4x8x8xbf16, #tpu.memory_space<vmem>>, vector<1x8x8xbf16>,
    %100 = vector.extract_strided_slice %87 {offsets = [0, 24], sizes = [8, 8], strides = [1, 1]} : vector<8x32xbf16> to vector<8x8xbf16>
    %c3_56 = arith.constant 3 : index
    %c0_57 = arith.constant 0 : index
    %c0_58 = arith.constant 0 : index
    %101 = vector.load %arg15[%c3_56, %c0_57, %c0_58] : memref<4x8x8xbf16, #tpu.memory_space<vmem>>, vector<1x8x8xbf16>
    %102 = vector.shape_cast %101 : vector<1x8x8xbf16> to vector<8x8xbf16>
    %103 = vector.shape_cast %100 : vector<8x8xbf16> to vector<1x8x8xbf16>
    tpu.vector_store %arg15[%c3_56, %c0_57, %c0_58], %103 {strides = array<i32>} : memref<4x8x8xbf16, #tpu.memory_space<vmem>>, vector<1x8x8xbf16>,
    %cst_59 = arith.constant 0.000000e+00 : f32
    %104 = vector.broadcast %cst_59 : f32 to vector<8x32xf32>
    %c0_60 = arith.constant 0 : index
    %c0_61 = arith.constant 0 : index
    %105 = vector.load %arg16[%c0_60, %c0_61] : memref<8x32xf32, #tpu.memory_space<vmem>>, vector<8x32xf32>
    tpu.vector_store %arg16[%c0_60, %c0_61], %104 {strides = array<i32>} : memref<8x32xf32, #tpu.memory_space<vmem>>, vector<8x32xf32>,
    %c0_i32 = arith.constant 0 : i32
    %c4_i32 = arith.constant 4 : i32
    %106 = arith.addi %c0_i32, %c4_i32 : i32
    %c1_i32 = arith.constant 1 : i32
    scf.for %arg17 = %c0_i32 to %106 step %c1_i32  : i32 {
      %116 = arith.index_cast %arg17 : i32 to index
      %c0_70 = arith.constant 0 : index
      %c0_71 = arith.constant 0 : index
      %117 = vector.load %arg13[%116, %c0_70, %c0_71] : memref<4x8x8xbf16, #tpu.memory_space<vmem>>, vector<1x8x8xbf16>
      %118 = vector.shape_cast %117 : vector<1x8x8xbf16> to vector<8x8xbf16>
      %119 = arith.index_cast %arg17 : i32 to index
      %c0_72 = arith.constant 0 : index
      %c0_73 = arith.constant 0 : index
      %120 = vector.load %arg14[%119, %c0_72, %c0_73] : memref<4x8x8xbf16, #tpu.memory_space<vmem>>, vector<1x8x8xbf16>
      %121 = vector.shape_cast %120 : vector<1x8x8xbf16> to vector<8x8xbf16>
      %122 = arith.index_cast %arg17 : i32 to index
      %c0_74 = arith.constant 0 : index
      %c0_75 = arith.constant 0 : index
      %123 = vector.load %arg15[%122, %c0_74, %c0_75] : memref<4x8x8xbf16, #tpu.memory_space<vmem>>, vector<1x8x8xbf16>
      %124 = vector.shape_cast %123 : vector<1x8x8xbf16> to vector<8x8xbf16>
      "tpu.trace_start"() <{level = 10 : i32, message = "nd,md->nm"}> : () -> ()
      %cst_76 = arith.constant dense<0.000000e+00> : vector<8x8xf32>
      %125 = tpu.matmul %118, %121, %cst_76 {dimension_numbers = #tpu.dot_dimension_numbers<[1], [1], [0], [0], [0, 0, 1, 0], [], []>} : vector<8x8xbf16>, vector<8x8xbf16>, vector<8x8xf32> -> vector<8x8xf32>
      "tpu.trace_stop"() : () -> ()
      %cst_77 = arith.constant dense<0xFF800000> : vector<8xf32>
      %126 = vector.multi_reduction <maximumf>, %125, %cst_77 [1] : vector<8x8xf32> to vector<8xf32>
      %127 = vector.shape_cast %126 : vector<8xf32> to vector<8x1xf32>
      %128 = vector.broadcast %127 : vector<8x1xf32> to vector<8x8xf32>
      %129 = arith.subf %125, %128 : vector<8x8xf32>
      %130 = math.exp %129 : vector<8x8xf32>
      %cst_78 = arith.constant dense<0.000000e+00> : vector<8xf32>
      %131 = vector.multi_reduction <add>, %130, %cst_78 [1] : vector<8x8xf32> to vector<8xf32>
      %132 = vector.shape_cast %131 : vector<8xf32> to vector<8x1xf32>
      %133 = arith.truncf %130 : vector<8x8xf32> to vector<8x8xbf16>
      %cst_79 = arith.constant dense<0.000000e+00> : vector<8x8xf32>
      %134 = tpu.matmul %133, %124, %cst_79 {dimension_numbers = #tpu.dot_dimension_numbers<[1], [0], [0], [1], [0, 0, 1, 1], [], []>} : vector<8x8xbf16>, vector<8x8xbf16>, vector<8x8xf32> -> vector<8x8xf32>
      %135 = tpu.reciprocal %132 {approx = true} : vector<8x1xf32> -> vector<8x1xf32>
      %136 = vector.broadcast %135 : vector<8x1xf32> to vector<8x8xf32>
      %137 = arith.mulf %134, %136 : vector<8x8xf32>
      %c0_80 = arith.constant 0 : index
      %c0_81 = arith.constant 0 : index
      %138 = vector.load %arg16[%c0_80, %c0_81] : memref<8x32xf32, #tpu.memory_space<vmem>>, vector<8x32xf32>
      %139 = arith.truncf %137 : vector<8x8xf32> to vector<8x8xbf16>
      %140 = arith.index_cast %arg17 : i32 to index
      %c0_82 = arith.constant 0 : index
      %c0_83 = arith.constant 0 : index
      %141 = vector.load %arg10[%140, %c0_82, %c0_83] : memref<4x8x32xbf16, #tpu.memory_space<vmem>>, vector<1x8x32xbf16>
      %142 = vector.shape_cast %141 : vector<1x8x32xbf16> to vector<8x32xbf16>
      %cst_84 = arith.constant dense<0.000000e+00> : vector<8x32xf32>
      %143 = tpu.matmul %139, %142, %cst_84 {dimension_numbers = #tpu.dot_dimension_numbers<[1], [0], [0], [1], [0, 0, 1, 1], [], []>} : vector<8x8xbf16>, vector<8x32xbf16>, vector<8x32xf32> -> vector<8x32xf32>
      %144 = arith.addf %138, %143 : vector<8x32xf32>
      %c0_85 = arith.constant 0 : index
      %c0_86 = arith.constant 0 : index
      %145 = vector.load %arg16[%c0_85, %c0_86] : memref<8x32xf32, #tpu.memory_space<vmem>>, vector<8x32xf32>
      tpu.vector_store %arg16[%c0_85, %c0_86], %144 {strides = array<i32>} : memref<8x32xf32, #tpu.memory_space<vmem>>, vector<8x32xf32>,
    }
    %c4_i32_62 = arith.constant 4 : i32
    %c0_63 = arith.constant 0 : index
    %c0_64 = arith.constant 0 : index
    %107 = vector.load %arg16[%c0_63, %c0_64] : memref<8x32xf32, #tpu.memory_space<vmem>>, vector<8x32xf32>
    %c0_65 = arith.constant 0 : index
    %c0_66 = arith.constant 0 : index
    %108 = vector.load %arg11[%c0_65, %c0_66] : memref<1x32xf32, #tpu.memory_space<vmem>>, vector<1x32xf32>
    %109 = vector.shape_cast %108 : vector<1x32xf32> to vector<32xf32>
    %110 = vector.shape_cast %109 : vector<32xf32> to vector<1x32xf32>
    %111 = vector.broadcast %110 : vector<1x32xf32> to vector<8x32xf32>
    %112 = arith.addf %107, %111 : vector<8x32xf32>
    %c0_67 = arith.constant 0 : index
    %c0_68 = arith.constant 0 : index
    %c0_69 = arith.constant 0 : index
    %113 = vector.load %arg12[%c0_67, %c0_68, %c0_69] : memref<1x8x32xf32, #tpu.memory_space<vmem>>, vector<1x8x32xf32>
    %114 = vector.shape_cast %113 : vector<1x8x32xf32> to vector<8x32xf32>
    %115 = vector.shape_cast %112 : vector<8x32xf32> to vector<1x8x32xf32>
    tpu.vector_store %arg12[%c0_67, %c0_68, %c0_69], %115 {strides = array<i32>} : memref<1x8x32xf32, #tpu.memory_space<vmem>>, vector<1x8x32xf32>,
    return
  }
  func.func @transform_0(%arg0: i32) -> (i32, i32, i32) {
    %c0_i32 = arith.constant 0 : i32
    %c0_i32_0 = arith.constant 0 : i32
    %c0_i32_1 = arith.constant 0 : i32
    return %arg0, %c0_i32, %c0_i32_0 : i32, i32, i32
  }
  func.func @transform_1(%arg0: i32) -> (i32, i32) {
    %c0_i32 = arith.constant 0 : i32
    %c0_i32_0 = arith.constant 0 : i32
    %c0_i32_1 = arith.constant 0 : i32
    return %c0_i32, %c0_i32_0 : i32, i32
  }
  func.func @transform_2(%arg0: i32) -> (i32, i32) {
    %c0_i32 = arith.constant 0 : i32
    %c0_i32_0 = arith.constant 0 : i32
    %c0_i32_1 = arith.constant 0 : i32
    return %c0_i32, %c0_i32_0 : i32, i32
  }
  func.func @transform_3(%arg0: i32) -> (i32, i32) {
    %c0_i32 = arith.constant 0 : i32
    %c0_i32_0 = arith.constant 0 : i32
    %c0_i32_1 = arith.constant 0 : i32
    return %c0_i32, %c0_i32_0 : i32, i32
  }
  func.func @transform_4(%arg0: i32) -> (i32, i32) {
    %c0_i32 = arith.constant 0 : i32
    %c0_i32_0 = arith.constant 0 : i32
    %c0_i32_1 = arith.constant 0 : i32
    return %c0_i32, %c0_i32_0 : i32, i32
  }
  func.func @transform_5(%arg0: i32) -> (i32, i32) {
    %c0_i32 = arith.constant 0 : i32
    %c0_i32_0 = arith.constant 0 : i32
    %c0_i32_1 = arith.constant 0 : i32
    return %c0_i32, %c0_i32_0 : i32, i32
  }
  func.func @transform_6(%arg0: i32) -> (i32, i32) {
    %c0_i32 = arith.constant 0 : i32
    %c0_i32_0 = arith.constant 0 : i32
    %c0_i32_1 = arith.constant 0 : i32
    return %c0_i32, %c0_i32_0 : i32, i32
  }
  func.func @transform_7(%arg0: i32) -> (i32, i32) {
    %c0_i32 = arith.constant 0 : i32
    %c0_i32_0 = arith.constant 0 : i32
    %c0_i32_1 = arith.constant 0 : i32
    return %c0_i32, %c0_i32_0 : i32, i32
  }
  func.func @transform_8(%arg0: i32) -> (i32, i32) {
    %c0_i32 = arith.constant 0 : i32
    %c0_i32_0 = arith.constant 0 : i32
    %c0_i32_1 = arith.constant 0 : i32
    return %c0_i32, %c0_i32_0 : i32, i32
  }
  func.func @transform_9(%arg0: i32) -> (i32, i32, i32) {
    %c0_i32 = arith.constant 0 : i32
    %c0_i32_0 = arith.constant 0 : i32
    %c0_i32_1 = arith.constant 0 : i32
    %c0_i32_2 = arith.constant 0 : i32
    return %c0_i32, %c0_i32_0, %c0_i32_1 : i32, i32, i32
  }
  func.func @transform_10(%arg0: i32) -> (i32, i32) {
    %c0_i32 = arith.constant 0 : i32
    %c0_i32_0 = arith.constant 0 : i32
    %c0_i32_1 = arith.constant 0 : i32
    return %c0_i32, %c0_i32_0 : i32, i32
  }
  func.func @transform_11(%arg0: i32) -> (i32, i32, i32) {
    %c0_i32 = arith.constant 0 : i32
    %c0_i32_0 = arith.constant 0 : i32
    %c0_i32_1 = arith.constant 0 : i32
    return %arg0, %c0_i32, %c0_i32_0 : i32, i32, i32
  }
}

</mosaic_0001>

<llo_original>
// kernel: tpu_custom_call.1
$region0: #{tpu_custom_call.1}
  #allocation0 [shape = 'u32[]', space=smem, size = 0x4, offset = 0x4, fixed_abs, tag = 'smem constant byte address 0x4 - core index']
  #allocation1 [shape = 'u32[144,128]{1,0:T(1,128)}', space=vmem, size = 0x12000, scoped, tag = 'internal scratch']
  #allocation2 [shape = 'bf16[4,8,8]{2,1,0:T(8,128)(2,1)}', space=vmem, size = 0x2000, scoped, tag = 'scratch operand']
  #allocation3 [shape = 'bf16[4,8,8]{2,1,0:T(8,128)(2,1)}', space=vmem, size = 0x2000, scoped, tag = 'scratch operand']
  #allocation4 [shape = 'bf16[4,8,8]{2,1,0:T(8,128)(2,1)}', space=vmem, size = 0x2000, scoped, tag = 'scratch operand']
  #allocation5 [shape = 'f32[8,32]{1,0:T(8,128)}', space=vmem, size = 0x1000, scoped, tag = 'scratch operand']
  %s0 = inlined_call_operand.hbm [shape: bf16[2,8,32], index: 0, kind: input, shape index: {}]
  %s1 = inlined_call_operand.hbm [shape: bf16[32,32], index: 1, kind: input, shape index: {}]
  %s2 = inlined_call_operand.hbm [shape: f32[1,32], index: 2, kind: input, shape index: {}]
  %s3 = inlined_call_operand.hbm [shape: bf16[32,32], index: 3, kind: input, shape index: {}]
  %s4 = inlined_call_operand.hbm [shape: f32[1,32], index: 4, kind: input, shape index: {}]
  %s5 = inlined_call_operand.hbm [shape: bf16[32,32], index: 5, kind: input, shape index: {}]
  %s6 = inlined_call_operand.hbm [shape: f32[1,32], index: 6, kind: input, shape index: {}]
  %s7 = inlined_call_operand.hbm [shape: f32[1,32], index: 7, kind: input, shape index: {}]
  %s8 = inlined_call_operand.hbm [shape: f32[1,32], index: 8, kind: input, shape index: {}]
  %s9 = inlined_call_operand.vmem [shape: bf16[4,8,32], index: 9, kind: input, shape index: {}]
  %s10 = inlined_call_operand.vmem [shape: f32[1,32], index: 10, kind: input, shape index: {}]
  %s11 = inlined_call_operand.hbm [shape: f32[2,8,32], index: 11, kind: output, shape index: {}]
  %s12 = sld [smem:[#allocation0]]
  $region120: #{tpu_custom_call.1} parent=0
    _
  %s14 = ssub.s32 1, %s12
  %s15 = scalar_select 0, %s14, %s12
  $region1: #{tpu_custom_call.1} parent=0
    #allocation6 [shape = 'u8[4096]{0}', space=vmem, size = 0x1000, scoped, tag = 'input window, operand 0']
    #allocation7 [shape = 's32[2]{0}', space=sflag, size = 0x8, scoped, tag = 'scoped memory for tpu_custom_call.1']
    #allocation8 [shape = 's32[2]{0}', space=sflag, size = 0x8, scoped, tag = 'scoped memory for tpu_custom_call.1']
    #allocation9 [shape = 'u8[8192]{0}', space=vmem, size = 0x2000, scoped, tag = 'input window, operand 1, single buffered']
    #allocation10 [shape = 's32[1]{0}', space=sflag, size = 0x4, scoped, tag = 'scoped memory for tpu_custom_call.1']
    #allocation11 [shape = 'u8[512]{0}', space=vmem, size = 0x400, scoped, tag = 'input window, operand 2, single buffered']
    #allocation12 [shape = 'u8[8192]{0}', space=vmem, size = 0x2000, scoped, tag = 'input window, operand 3, single buffered']
    #allocation13 [shape = 's32[1]{0}', space=sflag, size = 0x4, scoped, tag = 'scoped memory for tpu_custom_call.1']
    #allocation14 [shape = 'u8[512]{0}', space=vmem, size = 0x400, scoped, tag = 'input window, operand 4, single buffered']
    #allocation15 [shape = 'u8[8192]{0}', space=vmem, size = 0x2000, scoped, tag = 'input window, operand 5, single buffered']
    #allocation16 [shape = 's32[1]{0}', space=sflag, size = 0x4, scoped, tag = 'scoped memory for tpu_custom_call.1']
    #allocation17 [shape = 'u8[512]{0}', space=vmem, size = 0x400, scoped, tag = 'input window, operand 6, single buffered']
    #allocation18 [shape = 'u8[512]{0}', space=vmem, size = 0x400, scoped, tag = 'input window, operand 7, single buffered']
    #allocation19 [shape = 's32[1]{0}', space=sflag, size = 0x4, scoped, tag = 'scoped memory for tpu_custom_call.1']
    #allocation20 [shape = 'u8[512]{0}', space=vmem, size = 0x400, scoped, tag = 'input window, operand 8, single buffered']
    #allocation21 [shape = 'u8[8192]{0}', space=vmem, size = 0x2000, scoped, tag = 'output window, operand 0']
    %16 = vsyncpa [#allocation7], 0
    %s17 = scalar_lea.sflag [#allocation7], 1
    %18 = vsyncpa %s17, 0
    %19 = vsyncpa [#allocation10], 0
    %20 = vsyncpa [#allocation13], 0
    %21 = vsyncpa [#allocation16], 0
    %22 = vsyncpa [#allocation19], 0
    %23 = vsyncpa [#allocation8], 0
    %s24 = scalar_lea.sflag [#allocation8], 1
    %25 = vsyncpa %s24, 0
    loop: start=0, step=1, limit=4
    $region2: #{tpu_custom_call.1} parent=1 // loop_pre_header
      _
    $region3: #{tpu_custom_call.1} parent=1 // loop_header
      %s27 = sphi 0, %s31
      %p28 = scmp.ge.s32.totalorder %s27, 4
      %s37 = sphi 0, %s39
      %s40 = sphi 0, %s37
      %s41 = sphi 0, %s40
      %s57 = sphi 0, %s41
      %s61 = sphi 0, %s61
      %s63 = sphi 0, %s61
      %s64 = sphi 0, %s63
      %s78 = sphi 0, %s64
      %s82 = sphi 0, %s82
      %s84 = sphi 0, %s82
      %s85 = sphi 0, %s84
      %s99 = sphi 0, %s85
      %s103 = sphi 0, %s103
      %s105 = sphi 0, %s103
      %s106 = sphi 0, %s105
      %s120 = sphi 0, %s106
      %s124 = sphi 0, %s124
      %s126 = sphi 0, %s124
      %s127 = sphi 0, %s126
      %s141 = sphi 0, %s127
      %s145 = sphi 0, %s145
      %s147 = sphi 0, %s145
      %s148 = sphi 0, %s147
      %s162 = sphi 0, %s148
      %s166 = sphi 0, %s166
      %s168 = sphi 0, %s166
      %s169 = sphi 0, %s168
      %s183 = sphi 0, %s169
      %s187 = sphi 0, %s187
      %s189 = sphi 0, %s187
      %s190 = sphi 0, %s189
      %s204 = sphi 0, %s190
      %s208 = sphi 0, %s208
      %s210 = sphi 0, %s208
      %s211 = sphi 0, %s210
      %s225 = sphi 0, %s211
      %s229 = sphi 0, %s229
      %s231 = sphi 0, %s229
      %s232 = sphi 0, %s231
      %s246 = sphi 0, %s232
      %s250 = sphi 0, %s250
      %s252 = sphi 0, %s250
      %s253 = sphi 0, %s252
      %s267 = sphi 0, %s253
      %s273 = sphi 0, %s275
      %s276 = sphi 0, %s273
      %s277 = sphi 0, %s276
      %s293 = sphi 0, %s277
    $region4: #{tpu_custom_call.1} parent=1 // loop_header_branch
      %30 = sbr.rel (%p28) target = $region8
    $region5: #{tpu_custom_call.1} parent=1 // loop_body
      %s32 = ssub.s32 %s27, 1
      %s33 = ssub.s32 %s27, 2
      %s34 = sadd.s32 %s27, 1
      %s35 = ssub.s32 %s27, %s34
      %p36 = scmp.eq.s32.totalorder %s35, 0
      %s38 = sadd.s32 %s37, 1
      %s39 = scalar_select %p36, %s37, %s38
      %p42 = pneg %p36
      %p43 = scmp.eq.s32.totalorder %s27, 1
      %p44 = por %p42, %p43
      %p45 = scmp.ne.s32.totalorder %s37, %s40
      %p46 = scmp.eq.s32.totalorder %s27, 0
      %p47 = por %p45, %p46
      %p48 = scmp.ne.s32.totalorder %s37, %s40
      %p49 = scmp.eq.s32.totalorder %s32, 1
      %p50 = por %p48, %p49
      %p51 = scmp.ne.s32.totalorder %s40, %s41
      %p52 = scmp.eq.s32.totalorder %s32, 0
      %p53 = por %p51, %p52
      %p54 = scmp.ne.s32.totalorder %s40, %s41
      %p55 = scmp.eq.s32.totalorder %s33, 1
      %p56 = por %p54, %p55
      %p58 = scmp.ne.s32.totalorder %s41, %s57
      %p59 = scmp.eq.s32.totalorder %s33, 0
      %p60 = por %p58, %p59
      %s62 = sadd.s32 %s61, 1
      %p65 = scmp.eq.s32.totalorder %s27, 1
      %p66 = scmp.ne.s32.totalorder %s61, %s63
      %p67 = scmp.eq.s32.totalorder %s27, 0
      %p68 = por %p66, %p67
      %p69 = scmp.ne.s32.totalorder %s61, %s63
      %p70 = scmp.eq.s32.totalorder %s32, 1
      %p71 = por %p69, %p70
      %p72 = scmp.ne.s32.totalorder %s63, %s64
      %p73 = scmp.eq.s32.totalorder %s32, 0
      %p74 = por %p72, %p73
      %p75 = scmp.ne.s32.totalorder %s63, %s64
      %p76 = scmp.eq.s32.totalorder %s33, 1
      %p77 = por %p75, %p76
      %p79 = scmp.ne.s32.totalorder %s64, %s78
      %p80 = scmp.eq.s32.totalorder %s33, 0
      %p81 = por %p79, %p80
      %s83 = sadd.s32 %s82, 1
      %p86 = scmp.eq.s32.totalorder %s27, 1
      %p87 = scmp.ne.s32.totalorder %s82, %s84
      %p88 = scmp.eq.s32.totalorder %s27, 0
      %p89 = por %p87, %p88
      %p90 = scmp.ne.s32.totalorder %s82, %s84
      %p91 = scmp.eq.s32.totalorder %s32, 1
      %p92 = por %p90, %p91
      %p93 = scmp.ne.s32.totalorder %s84, %s85
      %p94 = scmp.eq.s32.totalorder %s32, 0
      %p95 = por %p93, %p94
      %p96 = scmp.ne.s32.totalorder %s84, %s85
      %p97 = scmp.eq.s32.totalorder %s33, 1
      %p98 = por %p96, %p97
      %p100 = scmp.ne.s32.totalorder %s85, %s99
      %p101 = scmp.eq.s32.totalorder %s33, 0
      %p102 = por %p100, %p101
      %s104 = sadd.s32 %s103, 1
      %p107 = scmp.eq.s32.totalorder %s27, 1
      %p108 = scmp.ne.s32.totalorder %s103, %s105
      %p109 = scmp.eq.s32.totalorder %s27, 0
      %p110 = por %p108, %p109
      %p111 = scmp.ne.s32.totalorder %s103, %s105
      %p112 = scmp.eq.s32.totalorder %s32, 1
      %p113 = por %p111, %p112
      %p114 = scmp.ne.s32.totalorder %s105, %s106
      %p115 = scmp.eq.s32.totalorder %s32, 0
      %p116 = por %p114, %p115
      %p117 = scmp.ne.s32.totalorder %s105, %s106
      %p118 = scmp.eq.s32.totalorder %s33, 1
      %p119 = por %p117, %p118
      %p121 = scmp.ne.s32.totalorder %s106, %s120
      %p122 = scmp.eq.s32.totalorder %s33, 0
      %p123 = por %p121, %p122
      %s125 = sadd.s32 %s124, 1
      %p128 = scmp.eq.s32.totalorder %s27, 1
      %p129 = scmp.ne.s32.totalorder %s124, %s126
      %p130 = scmp.eq.s32.totalorder %s27, 0
      %p131 = por %p129, %p130
      %p132 = scmp.ne.s32.totalorder %s124, %s126
      %p133 = scmp.eq.s32.totalorder %s32, 1
      %p134 = por %p132, %p133
      %p135 = scmp.ne.s32.totalorder %s126, %s127
      %p136 = scmp.eq.s32.totalorder %s32, 0
      %p137 = por %p135, %p136
      %p138 = scmp.ne.s32.totalorder %s126, %s127
      %p139 = scmp.eq.s32.totalorder %s33, 1
      %p140 = por %p138, %p139
      %p142 = scmp.ne.s32.totalorder %s127, %s141
      %p143 = scmp.eq.s32.totalorder %s33, 0
      %p144 = por %p142, %p143
      %s146 = sadd.s32 %s145, 1
      %p149 = scmp.eq.s32.totalorder %s27, 1
      %p150 = scmp.ne.s32.totalorder %s145, %s147
      %p151 = scmp.eq.s32.totalorder %s27, 0
      %p152 = por %p150, %p151
      %p153 = scmp.ne.s32.totalorder %s145, %s147
      %p154 = scmp.eq.s32.totalorder %s32, 1
      %p155 = por %p153, %p154
      %p156 = scmp.ne.s32.totalorder %s147, %s148
      %p157 = scmp.eq.s32.totalorder %s32, 0
      %p158 = por %p156, %p157
      %p159 = scmp.ne.s32.totalorder %s147, %s148
      %p160 = scmp.eq.s32.totalorder %s33, 1
      %p161 = por %p159, %p160
      %p163 = scmp.ne.s32.totalorder %s148, %s162
      %p164 = scmp.eq.s32.totalorder %s33, 0
      %p165 = por %p163, %p164
      %s167 = sadd.s32 %s166, 1
      %p170 = scmp.eq.s32.totalorder %s27, 1
      %p171 = scmp.ne.s32.totalorder %s166, %s168
      %p172 = scmp.eq.s32.totalorder %s27, 0
      %p173 = por %p171, %p172
      %p174 = scmp.ne.s32.totalorder %s166, %s168
      %p175 = scmp.eq.s32.totalorder %s32, 1
      %p176 = por %p174, %p175
      %p177 = scmp.ne.s32.totalorder %s168, %s169
      %p178 = scmp.eq.s32.totalorder %s32, 0
      %p179 = por %p177, %p178
      %p180 = scmp.ne.s32.totalorder %s168, %s169
      %p181 = scmp.eq.s32.totalorder %s33, 1
      %p182 = por %p180, %p181
      %p184 = scmp.ne.s32.totalorder %s169, %s183
      %p185 = scmp.eq.s32.totalorder %s33, 0
      %p186 = por %p184, %p185
      %s188 = sadd.s32 %s187, 1
      %p191 = scmp.eq.s32.totalorder %s27, 1
      %p192 = scmp.ne.s32.totalorder %s187, %s189
      %p193 = scmp.eq.s32.totalorder %s27, 0
      %p194 = por %p192, %p193
      %p195 = scmp.ne.s32.totalorder %s187, %s189
      %p196 = scmp.eq.s32.totalorder %s32, 1
      %p197 = por %p195, %p196
      %p198 = scmp.ne.s32.totalorder %s189, %s190
      %p199 = scmp.eq.s32.totalorder %s32, 0
      %p200 = por %p198, %p199
      %p201 = scmp.ne.s32.totalorder %s189, %s190
      %p202 = scmp.eq.s32.totalorder %s33, 1
      %p203 = por %p201, %p202
      %p205 = scmp.ne.s32.totalorder %s190, %s204
      %p206 = scmp.eq.s32.totalorder %s33, 0
      %p207 = por %p205, %p206
      %s209 = sadd.s32 %s208, 1
      %p212 = scmp.eq.s32.totalorder %s27, 1
      %p213 = scmp.ne.s32.totalorder %s208, %s210
      %p214 = scmp.eq.s32.totalorder %s27, 0
      %p215 = por %p213, %p214
      %p216 = scmp.ne.s32.totalorder %s208, %s210
      %p217 = scmp.eq.s32.totalorder %s32, 1
      %p218 = por %p216, %p217
      %p219 = scmp.ne.s32.totalorder %s210, %s211
      %p220 = scmp.eq.s32.totalorder %s32, 0
      %p221 = por %p219, %p220
      %p222 = scmp.ne.s32.totalorder %s210, %s211
      %p223 = scmp.eq.s32.totalorder %s33, 1
      %p224 = por %p222, %p223
      %p226 = scmp.ne.s32.totalorder %s211, %s225
      %p227 = scmp.eq.s32.totalorder %s33, 0
      %p228 = por %p226, %p227
      %s230 = sadd.s32 %s229, 1
      %p233 = scmp.eq.s32.totalorder %s27, 1
      %p234 = scmp.ne.s32.totalorder %s229, %s231
      %p235 = scmp.eq.s32.totalorder %s27, 0
      %p236 = por %p234, %p235
      %p237 = scmp.ne.s32.totalorder %s229, %s231
      %p238 = scmp.eq.s32.totalorder %s32, 1
      %p239 = por %p237, %p238
      %p240 = scmp.ne.s32.totalorder %s231, %s232
      %p241 = scmp.eq.s32.totalorder %s32, 0
      %p242 = por %p240, %p241
      %p243 = scmp.ne.s32.totalorder %s231, %s232
      %p244 = scmp.eq.s32.totalorder %s33, 1
      %p245 = por %p243, %p244
      %p247 = scmp.ne.s32.totalorder %s232, %s246
      %p248 = scmp.eq.s32.totalorder %s33, 0
      %p249 = por %p247, %p248
      %s251 = sadd.s32 %s250, 1
      %p254 = scmp.eq.s32.totalorder %s27, 1
      %p255 = scmp.ne.s32.totalorder %s250, %s252
      %p256 = scmp.eq.s32.totalorder %s27, 0
      %p257 = por %p255, %p256
      %p258 = scmp.ne.s32.totalorder %s250, %s252
      %p259 = scmp.eq.s32.totalorder %s32, 1
      %p260 = por %p258, %p259
      %p261 = scmp.ne.s32.totalorder %s252, %s253
      %p262 = scmp.eq.s32.totalorder %s32, 0
      %p263 = por %p261, %p262
      %p264 = scmp.ne.s32.totalorder %s252, %s253
      %p265 = scmp.eq.s32.totalorder %s33, 1
      %p266 = por %p264, %p265
      %p268 = scmp.ne.s32.totalorder %s253, %s267
      %p269 = scmp.eq.s32.totalorder %s33, 0
      %p270 = por %p268, %p269
      %s271 = ssub.s32 %s27, %s34
      %p272 = scmp.eq.s32.totalorder %s271, 0
      %s274 = sadd.s32 %s273, 1
      %s275 = scalar_select %p272, %s273, %s274
      %p278 = pneg %p272
      %p279 = scmp.eq.s32.totalorder %s27, 1
      %p280 = por %p278, %p279
      %p281 = scmp.ne.s32.totalorder %s273, %s276
      %p282 = scmp.eq.s32.totalorder %s27, 0
      %p283 = por %p281, %p282
      %p284 = scmp.ne.s32.totalorder %s273, %s276
      %p285 = scmp.eq.s32.totalorder %s32, 1
      %p286 = por %p284, %p285
      %p287 = scmp.ne.s32.totalorder %s276, %s277
      %p288 = scmp.eq.s32.totalorder %s32, 0
      %p289 = por %p287, %p288
      %p290 = scmp.ne.s32.totalorder %s276, %s277
      %p291 = scmp.eq.s32.totalorder %s33, 1
      %p292 = por %p290, %p291
      %p294 = scmp.ne.s32.totalorder %s277, %s293
      %p295 = scmp.eq.s32.totalorder %s33, 0
      %p296 = por %p294, %p295
      %p297 = scmp.le.s32.totalorder 1, %s27
      %p298 = scmp.lt.s32.totalorder %s27, 3
      %p299 = pnand %p297, %p298
      %p300 = pneg %p299
      // Predicated region
      $region9: #{tpu_custom_call.1} parent=5 // pred_check
        _
      $region10: #{tpu_custom_call.1} parent=5 // pred_check_branch
        %302 = sbr.rel (%p299) target = $region12
      $region11: #{tpu_custom_call.1} parent=5 // pred_region
        %s303 = ssub.s32 %s27, 1
        // Predicated region
        $region13: #{tpu_custom_call.1} parent=11 // pred_check
          %p304 = pneg %p74
        $region14: #{tpu_custom_call.1} parent=11 // pred_check_branch
          %306 = sbr.rel (%p304) target = $region16
        $region15: #{tpu_custom_call.1} parent=11 // pred_region
          %s308 = ssub.s32 256, 256
          %309 = vsyncadd [#allocation10], %s308
          %s310 = sshll.u32 [#allocation9], 4
          %s311 = int_to_ptr.vmem [resolvable:$true] %s310
          %316 = dma.hbm_to_vmem [thread:$0]  %s1, 256, %s311, [#allocation10], 64, 64, 4
        $region16: #{tpu_custom_call.1} parent=11 // pred_fallthru
          _
        // Predicated region
        $region17: #{tpu_custom_call.1} parent=11 // pred_check
          %p317 = pneg %p95
        $region18: #{tpu_custom_call.1} parent=11 // pred_check_branch
          %319 = sbr.rel (%p317) target = $region20
        $region19: #{tpu_custom_call.1} parent=11 // pred_region
          %s321 = ssub.s32 16, 16
          %322 = vsyncadd [#allocation10], %s321
          %s324 = sshll.u32 [#allocation11], 4
          %s325 = int_to_ptr.vmem [resolvable:$true] %s324
          %327 = dma.hbm_to_vmem [thread:$0]  %s2, 16, %s325, [#allocation10]
        $region20: #{tpu_custom_call.1} parent=11 // pred_fallthru
          _
        // Predicated region
        $region21: #{tpu_custom_call.1} parent=11 // pred_check
          %p328 = pneg %p116
        $region22: #{tpu_custom_call.1} parent=11 // pred_check_branch
          %330 = sbr.rel (%p328) target = $region24
        $region23: #{tpu_custom_call.1} parent=11 // pred_region
          %s332 = ssub.s32 256, 256
          %333 = vsyncadd [#allocation13], %s332
          %s334 = sshll.u32 [#allocation12], 4
          %s335 = int_to_ptr.vmem [resolvable:$true] %s334
          %340 = dma.hbm_to_vmem [thread:$0]  %s3, 256, %s335, [#allocation13], 64, 64, 4
        $region24: #{tpu_custom_call.1} parent=11 // pred_fallthru
          _
        // Predicated region
        $region25: #{tpu_custom_call.1} parent=11 // pred_check
          %p341 = pneg %p137
        $region26: #{tpu_custom_call.1} parent=11 // pred_check_branch
          %343 = sbr.rel (%p341) target = $region28
        $region27: #{tpu_custom_call.1} parent=11 // pred_region
          %s345 = ssub.s32 16, 16
          %346 = vsyncadd [#allocation13], %s345
          %s348 = sshll.u32 [#allocation14], 4
          %s349 = int_to_ptr.vmem [resolvable:$true] %s348
          %351 = dma.hbm_to_vmem [thread:$0]  %s4, 16, %s349, [#allocation13]
        $region28: #{tpu_custom_call.1} parent=11 // pred_fallthru
          _
        // Predicated region
        $region29: #{tpu_custom_call.1} parent=11 // pred_check
          %p352 = pneg %p158
        $region30: #{tpu_custom_call.1} parent=11 // pred_check_branch
          %354 = sbr.rel (%p352) target = $region32
        $region31: #{tpu_custom_call.1} parent=11 // pred_region
          %s356 = ssub.s32 256, 256
          %357 = vsyncadd [#allocation16], %s356
          %s358 = sshll.u32 [#allocation15], 4
          %s359 = int_to_ptr.vmem [resolvable:$true] %s358
          %364 = dma.hbm_to_vmem [thread:$0]  %s5, 256, %s359, [#allocation16], 64, 64, 4
        $region32: #{tpu_custom_call.1} parent=11 // pred_fallthru
          _
        // Predicated region
        $region33: #{tpu_custom_call.1} parent=11 // pred_check
          %p365 = pneg %p179
        $region34: #{tpu_custom_call.1} parent=11 // pred_check_branch
          %367 = sbr.rel (%p365) target = $region36
        $region35: #{tpu_custom_call.1} parent=11 // pred_region
          %s369 = ssub.s32 16, 16
          %370 = vsyncadd [#allocation16], %s369
          %s372 = sshll.u32 [#allocation17], 4
          %s373 = int_to_ptr.vmem [resolvable:$true] %s372
          %375 = dma.hbm_to_vmem [thread:$0]  %s6, 16, %s373, [#allocation16]
        $region36: #{tpu_custom_call.1} parent=11 // pred_fallthru
          _
        // Predicated region
        $region37: #{tpu_custom_call.1} parent=11 // pred_check
          %p376 = pneg %p200
        $region38: #{tpu_custom_call.1} parent=11 // pred_check_branch
          %378 = sbr.rel (%p376) target = $region40
        $region39: #{tpu_custom_call.1} parent=11 // pred_region
          %s380 = ssub.s32 16, 16
          %381 = vsyncadd [#allocation19], %s380
          %s383 = sshll.u32 [#allocation18], 4
          %s384 = int_to_ptr.vmem [resolvable:$true] %s383
          %386 = dma.hbm_to_vmem [thread:$0]  %s7, 16, %s384, [#allocation19]
        $region40: #{tpu_custom_call.1} parent=11 // pred_fallthru
          _
        // Predicated region
        $region41: #{tpu_custom_call.1} parent=11 // pred_check
          %p387 = pneg %p221
        $region42: #{tpu_custom_call.1} parent=11 // pred_check_branch
          %389 = sbr.rel (%p387) target = $region44
        $region43: #{tpu_custom_call.1} parent=11 // pred_region
          %s391 = ssub.s32 16, 16
          %392 = vsyncadd [#allocation19], %s391
          %s394 = sshll.u32 [#allocation20], 4
          %s395 = int_to_ptr.vmem [resolvable:$true] %s394
          %397 = dma.hbm_to_vmem [thread:$0]  %s8, 16, %s395, [#allocation19]
        $region44: #{tpu_custom_call.1} parent=11 // pred_fallthru
          _
        // Predicated region
        $region45: #{tpu_custom_call.1} parent=11 // pred_check
          %p398 = pneg %p242
        $region46: #{tpu_custom_call.1} parent=11 // pred_check_branch
          %400 = sbr.rel (%p398) target = $region48
        $region47: #{tpu_custom_call.1} parent=11 // pred_region
          _
        $region48: #{tpu_custom_call.1} parent=11 // pred_fallthru
          _
        // Predicated region
        $region49: #{tpu_custom_call.1} parent=11 // pred_check
          %p401 = pneg %p263
        $region50: #{tpu_custom_call.1} parent=11 // pred_check_branch
          %403 = sbr.rel (%p401) target = $region52
        $region51: #{tpu_custom_call.1} parent=11 // pred_region
          _
        $region52: #{tpu_custom_call.1} parent=11 // pred_fallthru
          _
      $region12: #{tpu_custom_call.1} parent=5 // pred_fallthru
        _
      %p404 = scmp.lt.s32.totalorder %s27, 2
      // Predicated region
      $region53: #{tpu_custom_call.1} parent=5 // pred_check
        %p405 = pneg %p404
      $region54: #{tpu_custom_call.1} parent=5 // pred_check_branch
        %407 = sbr.rel (%p405) target = $region56
      $region55: #{tpu_custom_call.1} parent=5 // pred_region
        // Predicated region
        $region57: #{tpu_custom_call.1} parent=55 // pred_check
          %p408 = pneg %p47
        $region58: #{tpu_custom_call.1} parent=55 // pred_check_branch
          %410 = sbr.rel (%p408) target = $region60
        $region59: #{tpu_custom_call.1} parent=55 // pred_region
          %s411 = sand.u32 %s37, 1
          %s412 = scalar_lea.sflag [#allocation7], %s411
          %s413 = sand.u32 %s37, 1
          %s414 = smul.addr %s413, 4
          %s415 = scalar_lea.vmem [#allocation6], %s414
          %s417 = ssub.s32 64, 64
          %418 = vsyncadd %s412, %s417
          %s419 = smul.addr %s27, 64
          %s420 = scalar_lea.hbm %s0, %s419
          %s422 = sshll.u32 %s415, 4
          %s423 = int_to_ptr.vmem [resolvable:$true] %s422
          %425 = dma.hbm_to_vmem [thread:$0]  %s420, 64, %s423, %s412
        $region60: #{tpu_custom_call.1} parent=55 // pred_fallthru
          _
      $region56: #{tpu_custom_call.1} parent=5 // pred_fallthru
        _
      %p426 = scmp.le.s32.totalorder 1, %s27
      %p427 = scmp.lt.s32.totalorder %s27, 3
      %p428 = pnand %p426, %p427
      %p429 = pneg %p428
      // Predicated region
      $region61: #{tpu_custom_call.1} parent=5 // pred_check
        _
      $region62: #{tpu_custom_call.1} parent=5 // pred_check_branch
        %431 = sbr.rel (%p428) target = $region64
      $region63: #{tpu_custom_call.1} parent=5 // pred_region
        %s432 = ssub.s32 %s27, 1
        %s433 = sand.u32 %s40, 1
        %s434 = scalar_lea.sflag [#allocation7], %s433
        %s435 = sand.u32 %s40, 1
        %s436 = smul.addr %s435, 4
        %s437 = scalar_lea.vmem [#allocation6], %s436
        // Predicated region
        $region65: #{tpu_custom_call.1} parent=63 // pred_check
          %p438 = pneg %p53
        $region66: #{tpu_custom_call.1} parent=63 // pred_check_branch
          %440 = sbr.rel (%p438) target = $region68
        $region67: #{tpu_custom_call.1} parent=63 // pred_region
          %441 = dma.done %s434, 64
        $region68: #{tpu_custom_call.1} parent=63 // pred_fallthru
          _
        // Predicated region
        $region69: #{tpu_custom_call.1} parent=63 // pred_check
          %p442 = pneg %p74
        $region70: #{tpu_custom_call.1} parent=63 // pred_check_branch
          %444 = sbr.rel (%p442) target = $region72
        $region71: #{tpu_custom_call.1} parent=63 // pred_region
          %445 = dma.done [#allocation10], 256
        $region72: #{tpu_custom_call.1} parent=63 // pred_fallthru
          _
        // Predicated region
        $region73: #{tpu_custom_call.1} parent=63 // pred_check
          %p446 = pneg %p95
        $region74: #{tpu_custom_call.1} parent=63 // pred_check_branch
          %448 = sbr.rel (%p446) target = $region76
        $region75: #{tpu_custom_call.1} parent=63 // pred_region
          %449 = dma.done [#allocation10], 16
        $region76: #{tpu_custom_call.1} parent=63 // pred_fallthru
          _
        // Predicated region
        $region77: #{tpu_custom_call.1} parent=63 // pred_check
          %p450 = pneg %p116
        $region78: #{tpu_custom_call.1} parent=63 // pred_check_branch
          %452 = sbr.rel (%p450) target = $region80
        $region79: #{tpu_custom_call.1} parent=63 // pred_region
          %453 = dma.done [#allocation13], 256
        $region80: #{tpu_custom_call.1} parent=63 // pred_fallthru
          _
        // Predicated region
        $region81: #{tpu_custom_call.1} parent=63 // pred_check
          %p454 = pneg %p137
        $region82: #{tpu_custom_call.1} parent=63 // pred_check_branch
          %456 = sbr.rel (%p454) target = $region84
        $region83: #{tpu_custom_call.1} parent=63 // pred_region
          %457 = dma.done [#allocation13], 16
        $region84: #{tpu_custom_call.1} parent=63 // pred_fallthru
          _
        // Predicated region
        $region85: #{tpu_custom_call.1} parent=63 // pred_check
          %p458 = pneg %p158
        $region86: #{tpu_custom_call.1} parent=63 // pred_check_branch
          %460 = sbr.rel (%p458) target = $region88
        $region87: #{tpu_custom_call.1} parent=63 // pred_region
          %461 = dma.done [#allocation16], 256
        $region88: #{tpu_custom_call.1} parent=63 // pred_fallthru
          _
        // Predicated region
        $region89: #{tpu_custom_call.1} parent=63 // pred_check
          %p462 = pneg %p179
        $region90: #{tpu_custom_call.1} parent=63 // pred_check_branch
          %464 = sbr.rel (%p462) target = $region92
        $region91: #{tpu_custom_call.1} parent=63 // pred_region
          %465 = dma.done [#allocation16], 16
        $region92: #{tpu_custom_call.1} parent=63 // pred_fallthru
          _
        // Predicated region
        $region93: #{tpu_custom_call.1} parent=63 // pred_check
          %p466 = pneg %p200
        $region94: #{tpu_custom_call.1} parent=63 // pred_check_branch
          %468 = sbr.rel (%p466) target = $region96
        $region95: #{tpu_custom_call.1} parent=63 // pred_region
          %469 = dma.done [#allocation19], 16
        $region96: #{tpu_custom_call.1} parent=63 // pred_fallthru
          _
        // Predicated region
        $region97: #{tpu_custom_call.1} parent=63 // pred_check
          %p470 = pneg %p221
        $region98: #{tpu_custom_call.1} parent=63 // pred_check_branch
          %472 = sbr.rel (%p470) target = $region100
        $region99: #{tpu_custom_call.1} parent=63 // pred_region
          %473 = dma.done [#allocation19], 16
        $region100: #{tpu_custom_call.1} parent=63 // pred_fallthru
          _
        %s474 = sand.u32 %s40, 1
        %s475 = scalar_lea.sflag [#allocation7], %s474
        %s476 = sand.u32 %s40, 1
        %s477 = smul.addr %s476, 4
        %s478 = scalar_lea.vmem [#allocation6], %s477
        %p479 = pneg %p53
        %p480 = pneg %p50
        %p481 = pneg %p74
        %p482 = pneg %p71
        %p483 = pneg %p95
        %p484 = pneg %p92
        %p485 = pneg %p116
        %p486 = pneg %p113
        %p487 = pneg %p137
        %p488 = pneg %p134
        %p489 = pneg %p158
        %p490 = pneg %p155
        %p491 = pneg %p179
        %p492 = pneg %p176
        %p493 = pneg %p200
        %p494 = pneg %p197
        %p495 = pneg %p221
        %p496 = pneg %p218
        %p497 = pneg %p242
        %p498 = pneg %p239
        %p499 = pneg %p263
        %p500 = pneg %p260
        %p501 = pneg %p289
        %p502 = pneg %p286
        %s503 = sand.u32 %s276, 1
        %s504 = scalar_lea.sflag [#allocation8], %s503
        %s505 = sand.u32 %s276, 1
        %s506 = smul.addr %s505, 8
        %s507 = scalar_lea.vmem [#allocation21], %s506
        %v509 = vld [vmem:[%s437] sm:$0xf]
        %v510 = vld [vmem:[#allocation9] sm:$0xf]
        %v511 = vld [vmem:[#allocation9 + $0x4] sm:$0xf]
        %v512 = vld [vmem:[#allocation9 + $0x8] sm:$0xf]
        %v513 = vld [vmem:[#allocation9 + $0xc] sm:$0xf]
        %v514 = vld [vmem:[#allocation11] sm:$0x1]
        %v516 = vlaneseq
        %v517 = vshrl.u32 %v516, 7
        %v518 = vsub.s32 0, %v517
        %v519 = vrot.slane %v514, %v518
        %v525 = vunpack.c.l.b16 %v510
        %v526 = vunpack.c.l.b16 %v511
        %v527 = vunpack.c.l.b16 %v512
        %v528 = vunpack.c.l.b16 %v513
        %v529 = vpack.c.b16 %v526, %v525
        %v530 = vpack.c.b16 %v528, %v527
        %vm533 = vcmask 261120
        %v535 = vsel %vm533, %v509, 0
        %537 = vmatprep.subr.bf16.mxu0 0
        %538 = vmatpush1.bf16.msra.mxu0 0
        %539 = vmatprep.subr.bf16.mxu0 0
        %540 = vmatpush1.bf16.msra.mxu0 0
        %541 = vmatprep.subr.bf16.mxu0 0
        %542 = vmatpush1.bf16.msra.mxu0 0
        %543 = vmatprep.subr.bf16.mxu0 0
        %544 = vmatpush1.bf16.msra.mxu0 0
        %545 = vmatprep.subr.bf16.mxu0 0
        %546 = vmatpush1.bf16.msra.mxu0 0
        %547 = vmatprep.subr.bf16.mxu0 0
        %548 = vmatpush1.bf16.msra.mxu0 0
        %549 = vmatprep.subr.bf16.mxu0 0
        %550 = vmatpush1.bf16.msra.mxu0 %v530
        %551 = vmatprep.subr.bf16.mxu0 0
        %552 = vmatpush1.bf16.msra.mxu0 %v529
        %553 = vmatprep.subr.bf16.mxu0 0
        %554 = vmatpush2.bf16.msra.mxu0 0
        %555 = vmatprep.subr.bf16.mxu0 0
        %556 = vmatpush2.bf16.msra.mxu0 0
        %557 = vmatprep.subr.bf16.mxu0 0
        %558 = vmatpush2.bf16.msra.mxu0 0
        %559 = vmatprep.subr.bf16.mxu0 0
        %560 = vmatpush2.bf16.msra.mxu0 0
        %561 = vmatprep.subr.bf16.mxu0 0
        %562 = vmatpush2.bf16.msra.mxu0 0
        %563 = vmatprep.subr.bf16.mxu0 0
        %564 = vmatpush2.bf16.msra.mxu0 0
        %565 = vmatprep.subr.bf16.mxu0 0
        %566 = vmatpush2.bf16.msra.mxu0 0
        %567 = vmatprep.subr.bf16.mxu0 0
        %568 = vmatpush2.bf16.msra.mxu0 0
        %569 = vmatprep.mubr.bf16.mxu0 0
        %570 = vmatmul.mubr.bf16.gmra.mxu0 %v535
        %v571 = vpop.f32.mrf.mxu0
        %v572 = vadd.f32 %v519, %v571
        %v573 = vpop.f32.mrf.mxu0
        %v574 = vpop.f32.mrf.mxu0
        %v575 = vpop.f32.mrf.mxu0
        %576 = vdwg.mxu0
        %v577 = vld [vmem:[#allocation18] sm:$0x1]
        %v578 = vmul.f32 %v572, %v572
        %v579 = vsel %vm533, %v578, 0.0
        %580 = vadd.xlane.f32.xlu0 %v579
        %v581 = vpop.xlane.xlu0 %580
        %v582 = vrcp.pop 32.0
        %v583 = vmul.f32 %v581, %v582
        %v584 = vadd.f32 %v583, 1e-06
        %v585 = vrsqrt.pop %v584
        %v586 = vmul.f32 %v572, %v585
        %v588 = vlaneseq
        %v589 = vshrl.u32 %v588, 7
        %v590 = vsub.s32 0, %v589
        %v591 = vrot.slane %v577, %v590
        %v593 = vmul.f32 %v591, %v586
        %v594 = vpack.c.bf16 %v593, %v593
        %vm595 = vcmask 60416
        %596 = vst.msk [vmem:[#allocation2] sm:$0xf] %vm595, %v594
        %v598 = vunpack.c.l.b16 %v594
        %v599 = vpack.c.b16 %v598, %v598
        %600 = vrot.lane.b32.xlu0 %v599, 120
        %v601 = vpop.permute.xlu0 %600
        %s603 = scalar_lea.vmem [#allocation2], 4
        %604 = vst.msk [vmem:[%s603] sm:$0xf] %vm595, %v601
        %605 = vrot.lane.b32.xlu0 %v599, 112
        %v606 = vpop.permute.xlu0 %605
        %s608 = scalar_lea.vmem [#allocation2], 8
        %609 = vst.msk [vmem:[%s608] sm:$0xf] %vm595, %v606
        %610 = vrot.lane.b32.xlu0 %v599, 104
        %v611 = vpop.permute.xlu0 %610
        %s613 = scalar_lea.vmem [#allocation2], 12
        %614 = vst.msk [vmem:[%s613] sm:$0xf] %vm595, %v611
        %v615 = vld [vmem:[#allocation12] sm:$0xf]
        %v616 = vld [vmem:[#allocation12 + $0x4] sm:$0xf]
        %v617 = vld [vmem:[#allocation12 + $0x8] sm:$0xf]
        %v618 = vld [vmem:[#allocation12 + $0xc] sm:$0xf]
        %v619 = vld [vmem:[#allocation14] sm:$0x1]
        %v621 = vlaneseq
        %v622 = vshrl.u32 %v621, 7
        %v623 = vsub.s32 0, %v622
        %v624 = vrot.slane %v619, %v623
        %v630 = vunpack.c.l.b16 %v615
        %v631 = vunpack.c.l.b16 %v616
        %v632 = vunpack.c.l.b16 %v617
        %v633 = vunpack.c.l.b16 %v618
        %v634 = vpack.c.b16 %v631, %v630
        %v635 = vpack.c.b16 %v633, %v632
        %638 = vmatprep.subr.bf16.mxu0 0
        %639 = vmatpush1.bf16.msra.mxu0 0
        %640 = vmatprep.subr.bf16.mxu0 0
        %641 = vmatpush1.bf16.msra.mxu0 0
        %642 = vmatprep.subr.bf16.mxu0 0
        %643 = vmatpush1.bf16.msra.mxu0 0
        %644 = vmatprep.subr.bf16.mxu0 0
        %645 = vmatpush1.bf16.msra.mxu0 0
        %646 = vmatprep.subr.bf16.mxu0 0
        %647 = vmatpush1.bf16.msra.mxu0 0
        %648 = vmatprep.subr.bf16.mxu0 0
        %649 = vmatpush1.bf16.msra.mxu0 0
        %650 = vmatprep.subr.bf16.mxu0 0
        %651 = vmatpush1.bf16.msra.mxu0 %v635
        %652 = vmatprep.subr.bf16.mxu0 0
        %653 = vmatpush1.bf16.msra.mxu0 %v634
        %654 = vmatprep.subr.bf16.mxu0 0
        %655 = vmatpush2.bf16.msra.mxu0 0
        %656 = vmatprep.subr.bf16.mxu0 0
        %657 = vmatpush2.bf16.msra.mxu0 0
        %658 = vmatprep.subr.bf16.mxu0 0
        %659 = vmatpush2.bf16.msra.mxu0 0
        %660 = vmatprep.subr.bf16.mxu0 0
        %661 = vmatpush2.bf16.msra.mxu0 0
        %662 = vmatprep.subr.bf16.mxu0 0
        %663 = vmatpush2.bf16.msra.mxu0 0
        %664 = vmatprep.subr.bf16.mxu0 0
        %665 = vmatpush2.bf16.msra.mxu0 0
        %666 = vmatprep.subr.bf16.mxu0 0
        %667 = vmatpush2.bf16.msra.mxu0 0
        %668 = vmatprep.subr.bf16.mxu0 0
        %669 = vmatpush2.bf16.msra.mxu0 0
        %670 = vmatprep.mubr.bf16.mxu0 0
        %671 = vmatmul.mubr.bf16.gmra.mxu0 %v535
        %v672 = vpop.f32.mrf.mxu0
        %v673 = vadd.f32 %v624, %v672
        %v674 = vpop.f32.mrf.mxu0
        %v675 = vpop.f32.mrf.mxu0
        %v676 = vpop.f32.mrf.mxu0
        %677 = vdwg.mxu0
        %v678 = vld [vmem:[#allocation20] sm:$0x1]
        %v679 = vmul.f32 %v673, %v673
        %v680 = vsel %vm533, %v679, 0.0
        %681 = vadd.xlane.f32.xlu0 %v680
        %v682 = vpop.xlane.xlu0 %681
        %v683 = vmul.f32 %v682, %v582
        %v684 = vadd.f32 %v683, 1e-06
        %v685 = vrsqrt.pop %v684
        %v686 = vmul.f32 %v673, %v685
        %v688 = vlaneseq
        %v689 = vshrl.u32 %v688, 7
        %v690 = vsub.s32 0, %v689
        %v691 = vrot.slane %v678, %v690
        %v693 = vmul.f32 %v691, %v686
        %v694 = vpack.c.bf16 %v693, %v693
        %695 = vst.msk [vmem:[#allocation3] sm:$0xf] %vm595, %v694
        %v697 = vunpack.c.l.b16 %v694
        %v698 = vpack.c.b16 %v697, %v697
        %699 = vrot.lane.b32.xlu0 %v698, 120
        %v700 = vpop.permute.xlu0 %699
        %s702 = scalar_lea.vmem [#allocation3], 4
        %703 = vst.msk [vmem:[%s702] sm:$0xf] %vm595, %v700
        %704 = vrot.lane.b32.xlu0 %v698, 112
        %v705 = vpop.permute.xlu0 %704
        %s707 = scalar_lea.vmem [#allocation3], 8
        %708 = vst.msk [vmem:[%s707] sm:$0xf] %vm595, %v705
        %709 = vrot.lane.b32.xlu0 %v698, 104
        %v710 = vpop.permute.xlu0 %709
        %s712 = scalar_lea.vmem [#allocation3], 12
        %713 = vst.msk [vmem:[%s712] sm:$0xf] %vm595, %v710
        %v714 = vld [vmem:[#allocation15] sm:$0xf]
        %v715 = vld [vmem:[#allocation15 + $0x4] sm:$0xf]
        %v716 = vld [vmem:[#allocation15 + $0x8] sm:$0xf]
        %v717 = vld [vmem:[#allocation15 + $0xc] sm:$0xf]
        %v718 = vld [vmem:[#allocation17] sm:$0x1]
        %v720 = vlaneseq
        %v721 = vshrl.u32 %v720, 7
        %v722 = vsub.s32 0, %v721
        %v723 = vrot.slane %v718, %v722
        %v729 = vunpack.c.l.b16 %v714
        %v730 = vunpack.c.l.b16 %v715
        %v731 = vunpack.c.l.b16 %v716
        %v732 = vunpack.c.l.b16 %v717
        %v733 = vpack.c.b16 %v730, %v729
        %v734 = vpack.c.b16 %v732, %v731
        %737 = vmatprep.subr.bf16.mxu0 0
        %738 = vmatpush1.bf16.msra.mxu0 0
        %739 = vmatprep.subr.bf16.mxu0 0
        %740 = vmatpush1.bf16.msra.mxu0 0
        %741 = vmatprep.subr.bf16.mxu0 0
        %742 = vmatpush1.bf16.msra.mxu0 0
        %743 = vmatprep.subr.bf16.mxu0 0
        %744 = vmatpush1.bf16.msra.mxu0 0
        %745 = vmatprep.subr.bf16.mxu0 0
        %746 = vmatpush1.bf16.msra.mxu0 0
        %747 = vmatprep.subr.bf16.mxu0 0
        %748 = vmatpush1.bf16.msra.mxu0 0
        %749 = vmatprep.subr.bf16.mxu0 0
        %750 = vmatpush1.bf16.msra.mxu0 %v734
        %751 = vmatprep.subr.bf16.mxu0 0
        %752 = vmatpush1.bf16.msra.mxu0 %v733
        %753 = vmatprep.subr.bf16.mxu0 0
        %754 = vmatpush2.bf16.msra.mxu0 0
        %755 = vmatprep.subr.bf16.mxu0 0
        %756 = vmatpush2.bf16.msra.mxu0 0
        %757 = vmatprep.subr.bf16.mxu0 0
        %758 = vmatpush2.bf16.msra.mxu0 0
        %759 = vmatprep.subr.bf16.mxu0 0
        %760 = vmatpush2.bf16.msra.mxu0 0
        %761 = vmatprep.subr.bf16.mxu0 0
        %762 = vmatpush2.bf16.msra.mxu0 0
        %763 = vmatprep.subr.bf16.mxu0 0
        %764 = vmatpush2.bf16.msra.mxu0 0
        %765 = vmatprep.subr.bf16.mxu0 0
        %766 = vmatpush2.bf16.msra.mxu0 0
        %767 = vmatprep.subr.bf16.mxu0 0
        %768 = vmatpush2.bf16.msra.mxu0 0
        %769 = vmatprep.mubr.bf16.mxu0 0
        %770 = vmatmul.mubr.bf16.gmra.mxu0 %v535
        %v771 = vpop.f32.mrf.mxu0
        %v772 = vadd.f32 %v723, %v771
        %v773 = vpop.f32.mrf.mxu0
        %v774 = vpop.f32.mrf.mxu0
        %v775 = vpop.f32.mrf.mxu0
        %776 = vdwg.mxu0
        %v777 = vpack.c.bf16 %v772, %v772
        %778 = vst.msk [vmem:[#allocation4] sm:$0xf] %vm595, %v777
        %v780 = vunpack.c.l.b16 %v777
        %v781 = vpack.c.b16 %v780, %v780
        %782 = vrot.lane.b32.xlu0 %v781, 120
        %v783 = vpop.permute.xlu0 %782
        %s785 = scalar_lea.vmem [#allocation4], 4
        %786 = vst.msk [vmem:[%s785] sm:$0xf] %vm595, %v783
        %787 = vrot.lane.b32.xlu0 %v781, 112
        %v788 = vpop.permute.xlu0 %787
        %s790 = scalar_lea.vmem [#allocation4], 8
        %791 = vst.msk [vmem:[%s790] sm:$0xf] %vm595, %v788
        %792 = vrot.lane.b32.xlu0 %v781, 104
        %v793 = vpop.permute.xlu0 %792
        %s795 = scalar_lea.vmem [#allocation4], 12
        %796 = vst.msk [vmem:[%s795] sm:$0xf] %vm595, %v793
        %797 = vst.msk [vmem:[#allocation5] sm:$0xff] %vm533, 0.0
        loop: start=0, step=1, limit=4
        $region101: #{tpu_custom_call.1} parent=63 // loop_pre_header
          _
        $region102: #{tpu_custom_call.1} parent=63 // loop_header
          %s799 = sphi 0, %s803
          %p800 = scmp.ge.s32.totalorder %s799, 4
        $region103: #{tpu_custom_call.1} parent=63 // loop_header_branch
          %802 = sbr.rel (%p800) target = $region107
        $region104: #{tpu_custom_call.1} parent=63 // loop_body
          %s804 = smul.addr %s799, 4
          %s805 = scalar_lea.vmem [#allocation2], %s804
          %v806 = vld [vmem:[%s805] sm:$0xf]
          %s807 = smul.addr %s799, 4
          %s808 = scalar_lea.vmem [#allocation3], %s807
          %v809 = vld [vmem:[%s808] sm:$0xf]
          %s810 = smul.addr %s799, 4
          %s811 = scalar_lea.vmem [#allocation4], %s810
          %v812 = vld [vmem:[%s811] sm:$0xf]
          %vm813 = vcmask 64512
          %v815 = vsel %vm813, %v806, 0
          %v818 = vsel %vm813, %v809, 0
          %820 = vmatprep.subr.bf16.mxu0 0
          %821 = vmatpush1.bf16.xpose.msra.mxu0 0
          %822 = vmatprep.subr.bf16.mxu0 0
          %823 = vmatpush1.bf16.xpose.msra.mxu0 0
          %824 = vmatprep.subr.bf16.mxu0 0
          %825 = vmatpush1.bf16.xpose.msra.mxu0 0
          %826 = vmatprep.subr.bf16.mxu0 0
          %827 = vmatpush1.bf16.xpose.msra.mxu0 0
          %828 = vmatprep.subr.bf16.mxu0 0
          %829 = vmatpush1.bf16.xpose.msra.mxu0 0
          %830 = vmatprep.subr.bf16.mxu0 0
          %831 = vmatpush1.bf16.xpose.msra.mxu0 0
          %832 = vmatprep.subr.bf16.mxu0 0
          %833 = vmatpush1.bf16.xpose.msra.mxu0 0
          %834 = vmatprep.subr.bf16.mxu0 0
          %835 = vmatpush1.bf16.xpose.msra.mxu0 %v818
          %836 = vmatprep.subr.bf16.mxu0 0
          %837 = vmatpush2.bf16.xpose.msra.mxu0 0
          %838 = vmatprep.subr.bf16.mxu0 0
          %839 = vmatpush2.bf16.xpose.msra.mxu0 0
          %840 = vmatprep.subr.bf16.mxu0 0
          %841 = vmatpush2.bf16.xpose.msra.mxu0 0
          %842 = vmatprep.subr.bf16.mxu0 0
          %843 = vmatpush2.bf16.xpose.msra.mxu0 0
          %844 = vmatprep.subr.bf16.mxu0 0
          %845 = vmatpush2.bf16.xpose.msra.mxu0 0
          %846 = vmatprep.subr.bf16.mxu0 0
          %847 = vmatpush2.bf16.xpose.msra.mxu0 0
          %848 = vmatprep.subr.bf16.mxu0 0
          %849 = vmatpush2.bf16.xpose.msra.mxu0 0
          %850 = vmatprep.subr.bf16.mxu0 0
          %851 = vmatpush2.bf16.xpose.msra.mxu0 0
          %852 = vmatprep.mubr.bf16.mxu0 0
          %853 = vmatmul.mubr.bf16.gmra.mxu0 %v815
          %v854 = vpop.f32.mrf.mxu0
          %v855 = vadd.f32 0.0, %v854
          %v856 = vpop.f32.mrf.mxu0
          %v857 = vpop.f32.mrf.mxu0
          %v858 = vpop.f32.mrf.mxu0
          %859 = vdwg.mxu0
          %v860 = vsel %vm813, %v855, -inf
          %861 = vmax.xlane.f32.xlu0 %v860
          %v862 = vpop.xlane.xlu0 %861
          %v863 = vsub.f32 %v855, %v862
          %v864 = vmul.f32 %v863, 1.442695
          %v865 = vpow.pop %v864
          %v866 = vsel %vm813, %v865, 0.0
          %867 = vadd.xlane.f32.xlu0 %v866
          %v868 = vpop.xlane.xlu0 %867
          %v869 = vpack.c.bf16 %v865, %v865
          %v871 = vsel %vm813, %v869, 0
          %vm873 = vcmask 1043456
          %v875 = vsel %vm873, %v812, 0
          %877 = vmatprep.subr.bf16.mxu0 0
          %878 = vmatpush1.bf16.msra.mxu0 0
          %879 = vmatprep.subr.bf16.mxu0 0
          %880 = vmatpush1.bf16.msra.mxu0 0
          %881 = vmatprep.subr.bf16.mxu0 0
          %882 = vmatpush1.bf16.msra.mxu0 0
          %883 = vmatprep.subr.bf16.mxu0 0
          %884 = vmatpush1.bf16.msra.mxu0 0
          %885 = vmatprep.subr.bf16.mxu0 0
          %886 = vmatpush1.bf16.msra.mxu0 0
          %887 = vmatprep.subr.bf16.mxu0 0
          %888 = vmatpush1.bf16.msra.mxu0 0
          %889 = vmatprep.subr.bf16.mxu0 0
          %890 = vmatpush1.bf16.msra.mxu0 0
          %891 = vmatprep.subr.bf16.mxu0 0
          %892 = vmatpush1.bf16.msra.mxu0 %v875
          %893 = vmatprep.subr.bf16.mxu0 0
          %894 = vmatpush2.bf16.msra.mxu0 0
          %895 = vmatprep.subr.bf16.mxu0 0
          %896 = vmatpush2.bf16.msra.mxu0 0
          %897 = vmatprep.subr.bf16.mxu0 0
          %898 = vmatpush2.bf16.msra.mxu0 0
          %899 = vmatprep.subr.bf16.mxu0 0
          %900 = vmatpush2.bf16.msra.mxu0 0
          %901 = vmatprep.subr.bf16.mxu0 0
          %902 = vmatpush2.bf16.msra.mxu0 0
          %903 = vmatprep.subr.bf16.mxu0 0
          %904 = vmatpush2.bf16.msra.mxu0 0
          %905 = vmatprep.subr.bf16.mxu0 0
          %906 = vmatpush2.bf16.msra.mxu0 0
          %907 = vmatprep.subr.bf16.mxu0 0
          %908 = vmatpush2.bf16.msra.mxu0 0
          %909 = vmatprep.mubr.bf16.mxu0 0
          %910 = vmatmul.mubr.bf16.gmra.mxu0 %v871
          %v911 = vpop.f32.mrf.mxu0
          %v912 = vadd.f32 0.0, %v911
          %v913 = vpop.f32.mrf.mxu0
          %v914 = vpop.f32.mrf.mxu0
          %v915 = vpop.f32.mrf.mxu0
          %916 = vdwg.mxu0
          %v917 = vrcp.pop %v868
          %v918 = vmul.f32 %v912, %v917
          %v919 = vld [vmem:[#allocation5] sm:$0xff]
          %v920 = vpack.c.bf16 %v918, %v918
          %s921 = smul.addr %s799, 4
          %s922 = scalar_lea.vmem %s9, %s921
          %v923 = vld [vmem:[%s922] sm:$0xf]
          %v925 = vsel %vm813, %v920, 0
          %v928 = vsel %vm873, %v923, 0
          %930 = vmatprep.subr.bf16.mxu0 0
          %931 = vmatpush1.bf16.msra.mxu0 0
          %932 = vmatprep.subr.bf16.mxu0 0
          %933 = vmatpush1.bf16.msra.mxu0 0
          %934 = vmatprep.subr.bf16.mxu0 0
          %935 = vmatpush1.bf16.msra.mxu0 0
          %936 = vmatprep.subr.bf16.mxu0 0
          %937 = vmatpush1.bf16.msra.mxu0 0
          %938 = vmatprep.subr.bf16.mxu0 0
          %939 = vmatpush1.bf16.msra.mxu0 0
          %940 = vmatprep.subr.bf16.mxu0 0
          %941 = vmatpush1.bf16.msra.mxu0 0
          %942 = vmatprep.subr.bf16.mxu0 0
          %943 = vmatpush1.bf16.msra.mxu0 0
          %944 = vmatprep.subr.bf16.mxu0 0
          %945 = vmatpush1.bf16.msra.mxu0 %v928
          %946 = vmatprep.subr.bf16.mxu0 0
          %947 = vmatpush2.bf16.msra.mxu0 0
          %948 = vmatprep.subr.bf16.mxu0 0
          %949 = vmatpush2.bf16.msra.mxu0 0
          %950 = vmatprep.subr.bf16.mxu0 0
          %951 = vmatpush2.bf16.msra.mxu0 0
          %952 = vmatprep.subr.bf16.mxu0 0
          %953 = vmatpush2.bf16.msra.mxu0 0
          %954 = vmatprep.subr.bf16.mxu0 0
          %955 = vmatpush2.bf16.msra.mxu0 0
          %956 = vmatprep.subr.bf16.mxu0 0
          %957 = vmatpush2.bf16.msra.mxu0 0
          %958 = vmatprep.subr.bf16.mxu0 0
          %959 = vmatpush2.bf16.msra.mxu0 0
          %960 = vmatprep.subr.bf16.mxu0 0
          %961 = vmatpush2.bf16.msra.mxu0 0
          %962 = vmatprep.mubr.bf16.mxu0 0
          %963 = vmatmul.mubr.bf16.gmra.mxu0 %v925
          %v964 = vpop.f32.mrf.mxu0
          %v965 = vadd.f32 0.0, %v964
          %v966 = vpop.f32.mrf.mxu0
          %v967 = vpop.f32.mrf.mxu0
          %v968 = vpop.f32.mrf.mxu0
          %969 = vdwg.mxu0
          %v970 = vadd.f32 %v919, %v965
          %971 = vst.msk [vmem:[#allocation5] sm:$0xff] %vm533, %v970
        $region105: #{tpu_custom_call.1} parent=63 // loop_footer
          %s803 = sadd.s32 1, %s799
        $region106: #{tpu_custom_call.1} parent=63 // loop_footer_branch
          %798 = sbr.rel target = $region102
        $region107: #{tpu_custom_call.1} parent=63 // loop_exit
          _
        %v972 = vld [vmem:[#allocation5] sm:$0xff]
        %v973 = vld [vmem:[%s10] sm:$0x1]
        %v975 = vlaneseq
        %v976 = vshrl.u32 %v975, 7
        %v977 = vsub.s32 0, %v976
        %v978 = vrot.slane %v973, %v977
        %v980 = vadd.f32 %v972, %v978
        %981 = vst.msk [vmem:[%s507] sm:$0xff] %vm533, %v980
        %s982 = sand.u32 %s276, 1
        %s983 = scalar_lea.sflag [#allocation8], %s982
        %s984 = sand.u32 %s276, 1
        %s985 = smul.addr %s984, 8
        %s986 = scalar_lea.vmem [#allocation21], %s985
        // Predicated region
        $region108: #{tpu_custom_call.1} parent=63 // pred_check
          %p987 = pneg %p286
        $region109: #{tpu_custom_call.1} parent=63 // pred_check_branch
          %989 = sbr.rel (%p987) target = $region111
        $region110: #{tpu_custom_call.1} parent=63 // pred_region
          %s991 = ssub.s32 128, 128
          %992 = vsyncadd %s983, %s991
          %s993 = smul.addr %s32, 128
          %s994 = scalar_lea.hbm %s11, %s993
          %s996 = sshll.u32 %s986, 4
          %s997 = int_to_ptr.vmem [resolvable:$true] %s996
          %999 = dma.vmem_to_hbm [thread:$0]  %s997, 128, %s994, %s983
        $region111: #{tpu_custom_call.1} parent=63 // pred_fallthru
          _
      $region64: #{tpu_custom_call.1} parent=5 // pred_fallthru
        _
      %p1000 = scmp.le.s32.totalorder 2, %s27
      // Predicated region
      $region112: #{tpu_custom_call.1} parent=5 // pred_check
        %p1001 = pneg %p1000
      $region113: #{tpu_custom_call.1} parent=5 // pred_check_branch
        %1003 = sbr.rel (%p1001) target = $region115
      $region114: #{tpu_custom_call.1} parent=5 // pred_region
        %s1004 = ssub.s32 %s27, 2
        // Predicated region
        $region116: #{tpu_custom_call.1} parent=114 // pred_check
          %p1005 = pneg %p292
        $region117: #{tpu_custom_call.1} parent=114 // pred_check_branch
          %1007 = sbr.rel (%p1005) target = $region119
        $region118: #{tpu_custom_call.1} parent=114 // pred_region
          %s1008 = sand.u32 %s277, 1
          %s1009 = scalar_lea.sflag [#allocation8], %s1008
          %s1010 = sand.u32 %s277, 1
          %s1011 = smul.addr %s1010, 8
          %s1012 = scalar_lea.vmem [#allocation21], %s1011
          %1013 = dma.done %s1009, 128
        $region119: #{tpu_custom_call.1} parent=114 // pred_fallthru
          _
      $region115: #{tpu_custom_call.1} parent=5 // pred_fallthru
        _
    $region6: #{tpu_custom_call.1} parent=1 // loop_footer
      %s31 = sadd.s32 1, %s27
    $region7: #{tpu_custom_call.1} parent=1 // loop_footer_branch
      %26 = sbr.rel target = $region3
    $region8: #{tpu_custom_call.1} parent=1 // loop_exit
      _
    %1014 = vsyncpa [#allocation7], 1
    %s1015 = scalar_lea.sflag [#allocation7], 1
    %1016 = vsyncpa %s1015, 1
    %1017 = vsyncpa [#allocation10], 1
    %1018 = vsyncpa [#allocation13], 1
    %1019 = vsyncpa [#allocation16], 1
    %1020 = vsyncpa [#allocation19], 1
    %1021 = vsyncpa [#allocation8], 1
    %s1022 = scalar_lea.sflag [#allocation8], 1
    %1023 = vsyncpa %s1022, 1

</llo_original>
